<compile_context>
chip_gen: v7x
topology: tpu7x:2x2x1
jax: 0.10.0
libtpu: 0.0.40
codegen_flags: <defaults>
</compile_context>

<pallas_src>
import jax
import jax.numpy as jnp
from jax.experimental import pallas as pl
from jax.experimental.pallas import tpu as pltpu


def _make_generator_kernel(num_layers, T, H):
    """Fused stacked-LSTM -> BatchNorm1d(train) -> Linear -> tanh kernel."""

    def kernel(x_ref, *refs):
        # refs layout:
        #   per layer l: w_ih_T (in,4H), w_hh_T (H,4H), b (1,4H)   [gate order i,f,o,g]
        #   gamma (1,H), beta (1,H), fc_w_T (H,O_pad), fc_b (1,O_pad)
        #   out_ref (T, O_pad)
        idx = 0
        layer_params = []
        for _ in range(num_layers):
            layer_params.append((refs[idx], refs[idx + 1], refs[idx + 2]))
            idx += 3
        gamma_ref, beta_ref, fcw_ref, fcb_ref = refs[idx:idx + 4]
        out_ref = refs[idx + 4]

        row_ids = jax.lax.broadcasted_iota(jnp.int32, (T, H), 0)

        # ---- stacked LSTM (batch = 1), everything kept as values in vregs ----------
        seq = x_ref[...]                                         # (T, in_l)
        for (wih_ref, whh_ref, b_ref) in layer_params:
            # all-timestep input projection in one MXU matmul (loop invariant)
            gates_in = (jnp.dot(seq, wih_ref[...],
                                preferred_element_type=jnp.float32)
                        + b_ref[...])                            # (T, 4H)
            whh = whh_ref[...]                                   # (H, 4H)

            h = jnp.zeros((1, H), jnp.float32)
            c = jnp.zeros((1, H), jnp.float32)
            acc = jnp.zeros((T, H), jnp.float32)
            for t in range(T):                                   # fully unrolled (T static)
                g = gates_in[t:t + 1, :] + jnp.dot(
                    h, whh, preferred_element_type=jnp.float32)  # (1, 4H)
                # gate order (i, f, o, g): single sigmoid on a contiguous 3H slice
                sig = jax.nn.sigmoid(g[:, 0:3 * H])
                i_g = sig[:, 0:H]
                f_g = sig[:, H:2 * H]
                o_g = sig[:, 2 * H:3 * H]
                g_g = jnp.tanh(g[:, 3 * H:4 * H])
                c = f_g * c + i_g * g_g
                h = o_g * jnp.tanh(c)
                # scatter h into row t of the in-vreg sequence (off the h->h chain)
                acc = jnp.where(row_ids == t, h, acc)
            seq = acc                                            # (T, H)

        # ---- BatchNorm1d over the seq dim (training-mode stats), single fused pass --
        s = jnp.sum(seq, axis=0, keepdims=True)                  # (1, H)
        ss = jnp.sum(seq * seq, axis=0, keepdims=True)           # (1, H)
        mean = s * (1.0 / T)
        var = ss * (1.0 / T) - mean * mean                       # biased variance
        scale = gamma_ref[...] * jax.lax.rsqrt(var + 1e-5)       # (1, H)
        shift = beta_ref[...] - mean * scale                     # (1, H)
        normed = seq * scale + shift                             # (T, H)

        # ---- Linear + tanh (lane-dense padded output) --------------------------------
        y = jnp.dot(normed, fcw_ref[...],
                    preferred_element_type=jnp.float32) + fcb_ref[...]
        out_ref[...] = jnp.tanh(y)

    return kernel


def generator_forward(x, params, *, hidden_size, output_size):
    """x: (seq_len, 1, input_size) float32. Returns (seq_len, 1, output_size)."""
    T, B, I = x.shape
    assert B == 1, "module's .squeeze() + BatchNorm1d implies batch == 1"
    H, O = hidden_size, output_size
    O_pad = ((O + 127) // 128) * 128                 # lane-dense output stores
    num_layers = len(params["lstm"])

    x2d = x.reshape(T, I)

    def reorder(w):                                   # columns (i,f,g,o) -> (i,f,o,g)
        return jnp.concatenate([w[:, :2 * H], w[:, 3 * H:4 * H], w[:, 2 * H:3 * H]],
                               axis=1)

    flat_inputs = [x2d]
    for (w_ih, w_hh, b) in params["lstm"]:
        flat_inputs += [reorder(w_ih), reorder(w_hh), reorder(b)]

    fc_w = jnp.zeros((H, O_pad), jnp.float32).at[:, :O].set(params["fc_w"])
    fc_b = jnp.zeros((1, O_pad), jnp.float32).at[:, :O].set(params["fc_b"])
    flat_inputs += [params["gamma"], params["beta"], fc_w, fc_b]

    # advisory cost hint for the XLA scheduler around the custom call
    flops = 0
    in_l = I
    for _ in range(num_layers):
        flops += 2 * T * in_l * 4 * H + 2 * T * H * 4 * H
        in_l = H
    flops += 2 * T * H * O_pad
    transcendentals = num_layers * T * 5 * H + H + T * O_pad
    bytes_accessed = 4 * (sum(int(a.size) for a in flat_inputs) + T * O_pad)

    vmem = pl.BlockSpec(memory_space=pltpu.MemorySpace.VMEM)
    kernel = _make_generator_kernel(num_layers, T, H)

    # NOTE: no grid — the whole problem is a few KiB and the recurrence is serial.
    # TODO(synk): if many independent sequences are run, add a leading "parallel"
    # grid axis over them (uses both TensorCores on v7x and batches the M=1 matmuls).
    out2d = pl.pallas_call(
        kernel,
        out_shape=jax.ShapeDtypeStruct((T, O_pad), jnp.float32),
        in_specs=[vmem] * len(flat_inputs),
        out_specs=vmem,
        cost_estimate=pl.CostEstimate(flops=flops,
                                      transcendentals=transcendentals,
                                      bytes_accessed=bytes_accessed),
    )(*flat_inputs)

    return out2d[:, :O].reshape(T, 1, O)


def init_params(key, input_size, hidden_size, num_layers, output_size):
    """Deterministic synthetic parameters, PyTorch-style uniform(-1/sqrt(H), 1/sqrt(H)).

    Canonical gate order (i, f, g, o), weights stored pre-transposed for
    (seq, in) @ (in, 4H) matmuls; the kernel wrapper permutes gate columns.
    """
    H = hidden_size
    bound = 1.0 / jnp.sqrt(jnp.float32(H))
    lstm = []
    for l in range(num_layers):
        in_l = input_size if l == 0 else H
        key, k1, k2, k3, k4 = jax.random.split(key, 5)
        w_ih = jax.random.uniform(k1, (in_l, 4 * H), jnp.float32, -bound, bound)
        w_hh = jax.random.uniform(k2, (H, 4 * H), jnp.float32, -bound, bound)
        b_ih = jax.random.uniform(k3, (1, 4 * H), jnp.float32, -bound, bound)
        b_hh = jax.random.uniform(k4, (1, 4 * H), jnp.float32, -bound, bound)
        lstm.append((w_ih, w_hh, b_ih + b_hh))
    key, kf1, kf2 = jax.random.split(key, 3)
    fbound = 1.0 / jnp.sqrt(jnp.float32(H))
    fc_w = jax.random.uniform(kf1, (H, output_size), jnp.float32, -fbound, fbound)
    fc_b = jax.random.uniform(kf2, (1, output_size), jnp.float32, -fbound, fbound)
    return {
        "lstm": lstm,
        "gamma": jnp.ones((1, H), jnp.float32),
        "beta": jnp.zeros((1, H), jnp.float32),
        "fc_w": fc_w,
        "fc_b": fc_b,
    }


def _reference_forward(x, params, hidden_size, output_size):
    """Pure-JAX reference mirroring the PyTorch forward (training-mode BN)."""
    T, _, I = x.shape
    H = hidden_size
    seq = x.reshape(T, I)
    hp = jax.lax.Precision.HIGHEST
    for (w_ih, w_hh, b) in params["lstm"]:
        gates_in = jnp.dot(seq, w_ih, precision=hp) + b
        h = jnp.zeros((1, H), jnp.float32)
        c = jnp.zeros((1, H), jnp.float32)
        outs = []
        for t in range(T):
            g = gates_in[t:t + 1] + jnp.dot(h, w_hh, precision=hp)
            i_g = jax.nn.sigmoid(g[:, 0:H])
            f_g = jax.nn.sigmoid(g[:, H:2 * H])
            g_g = jnp.tanh(g[:, 2 * H:3 * H])
            o_g = jax.nn.sigmoid(g[:, 3 * H:4 * H])
            c = f_g * c + i_g * g_g
            h = o_g * jnp.tanh(c)
            outs.append(h)
        seq = jnp.concatenate(outs, axis=0)
    mean = jnp.mean(seq, axis=0, keepdims=True)
    var = jnp.mean((seq - mean) ** 2, axis=0, keepdims=True)
    normed = (seq - mean) / jnp.sqrt(var + 1e-5)
    normed = normed * params["gamma"] + params["beta"]
    y = jnp.tanh(jnp.dot(normed, params["fc_w"], precision=hp) + params["fc_b"])
    return y.reshape(T, 1, output_size)


if __name__ == "__main__":
    input_size, hidden_size, num_layers, output_size = 16, 32, 2, 8
    seq_len, batch = 8, 1   # .squeeze() + BatchNorm1d(hidden) implies batch == 1

    key = jax.random.PRNGKey(0)
    key, kx = jax.random.split(key)
    x = jax.random.normal(kx, (seq_len, batch, input_size), jnp.float32)

    params = init_params(key, input_size, hidden_size, num_layers, output_size)

    out = generator_forward(x, params, hidden_size=hidden_size,
                            output_size=output_size)
    out = jax.block_until_ready(out)

    ref = _reference_forward(x, params, hidden_size, output_size)
    assert out.shape == (seq_len, 1, output_size)
    assert bool(jnp.all(jnp.isfinite(out)))
    assert bool(jnp.allclose(out, ref, atol=1e-2, rtol=1e-2))

    print("KERNEL_OK")
</pallas_src>

<mosaic_0001>
module attributes {stable_mosaic.version = 11 : i64} {
  func.func @kernel(%arg0: memref<8x16xf32, #tpu.memory_space<vmem>>, %arg1: memref<16x128xf32, #tpu.memory_space<vmem>>, %arg2: memref<32x128xf32, #tpu.memory_space<vmem>>, %arg3: memref<1x128xf32, #tpu.memory_space<vmem>>, %arg4: memref<32x128xf32, #tpu.memory_space<vmem>>, %arg5: memref<32x128xf32, #tpu.memory_space<vmem>>, %arg6: memref<1x128xf32, #tpu.memory_space<vmem>>, %arg7: memref<1x32xf32, #tpu.memory_space<vmem>>, %arg8: memref<1x32xf32, #tpu.memory_space<vmem>>, %arg9: memref<32x128xf32, #tpu.memory_space<vmem>>, %arg10: memref<1x128xf32, #tpu.memory_space<vmem>>, %arg11: memref<8x128xf32, #tpu.memory_space<vmem>>) attributes {dimension_semantics = [], scalar_prefetch = 0 : i64, scratch_operands = 0 : i64, tpu.core_type = #tpu.core_type<tc>} {
    %0 = tpu.iota {dimensions = array<i32: 0>} : vector<8x32xi32>
    %c0 = arith.constant 0 : index
    %c0_0 = arith.constant 0 : index
    %1 = vector.load %arg0[%c0, %c0_0] : memref<8x16xf32, #tpu.memory_space<vmem>>, vector<8x16xf32>
    %c0_1 = arith.constant 0 : index
    %c0_2 = arith.constant 0 : index
    %2 = vector.load %arg1[%c0_1, %c0_2] : memref<16x128xf32, #tpu.memory_space<vmem>>, vector<16x128xf32>
    %cst = arith.constant dense<0.000000e+00> : vector<8x128xf32>
    %3 = tpu.matmul %1, %2, %cst {dimension_numbers = #tpu.dot_dimension_numbers<[1], [0], [0], [1], [0, 0, 1, 1], [], []>} : vector<8x16xf32>, vector<16x128xf32>, vector<8x128xf32> -> vector<8x128xf32>
    %c0_3 = arith.constant 0 : index
    %c0_4 = arith.constant 0 : index
    %4 = vector.load %arg3[%c0_3, %c0_4] : memref<1x128xf32, #tpu.memory_space<vmem>>, vector<1x128xf32>
    %5 = vector.broadcast %4 : vector<1x128xf32> to vector<8x128xf32>
    %6 = arith.addf %3, %5 : vector<8x128xf32>
    %c0_5 = arith.constant 0 : index
    %c0_6 = arith.constant 0 : index
    %7 = vector.load %arg2[%c0_5, %c0_6] : memref<32x128xf32, #tpu.memory_space<vmem>>, vector<32x128xf32>
    %cst_7 = arith.constant 0.000000e+00 : f32
    %8 = vector.broadcast %cst_7 : f32 to vector<1x32xf32>
    %cst_8 = arith.constant 0.000000e+00 : f32
    %9 = vector.broadcast %cst_8 : f32 to vector<1x32xf32>
    %cst_9 = arith.constant 0.000000e+00 : f32
    %10 = vector.broadcast %cst_9 : f32 to vector<8x32xf32>
    %11 = vector.extract_strided_slice %6 {offsets = [0, 0], sizes = [1, 128], strides = [1, 1]} : vector<8x128xf32> to vector<1x128xf32>
    %cst_10 = arith.constant dense<0.000000e+00> : vector<1x128xf32>
    %12 = tpu.matmul %8, %7, %cst_10 {dimension_numbers = #tpu.dot_dimension_numbers<[1], [0], [0], [1], [0, 0, 1, 1], [], []>} : vector<1x32xf32>, vector<32x128xf32>, vector<1x128xf32> -> vector<1x128xf32>
    %13 = arith.addf %11, %12 : vector<1x128xf32>
    %14 = vector.extract_strided_slice %13 {offsets = [0, 0], sizes = [1, 96], strides = [1, 1]} : vector<1x128xf32> to vector<1x96xf32>
    %15 = arith.negf %14 : vector<1x96xf32>
    %16 = math.exp %15 : vector<1x96xf32>
    %cst_11 = arith.constant 1.000000e+00 : f32
    %17 = vector.broadcast %cst_11 : f32 to vector<1x96xf32>
    %18 = arith.addf %17, %16 : vector<1x96xf32>
    %19 = arith.divf %17, %18 : vector<1x96xf32>
    %20 = vector.extract_strided_slice %19 {offsets = [0, 0], sizes = [1, 32], strides = [1, 1]} : vector<1x96xf32> to vector<1x32xf32>
    %21 = vector.extract_strided_slice %19 {offsets = [0, 32], sizes = [1, 32], strides = [1, 1]} : vector<1x96xf32> to vector<1x32xf32>
    %22 = vector.extract_strided_slice %19 {offsets = [0, 64], sizes = [1, 32], strides = [1, 1]} : vector<1x96xf32> to vector<1x32xf32>
    %23 = vector.extract_strided_slice %13 {offsets = [0, 96], sizes = [1, 32], strides = [1, 1]} : vector<1x128xf32> to vector<1x32xf32>
    %24 = math.tanh %23 : vector<1x32xf32>
    %25 = arith.mulf %21, %9 : vector<1x32xf32>
    %26 = arith.mulf %20, %24 : vector<1x32xf32>
    %27 = arith.addf %25, %26 : vector<1x32xf32>
    %28 = math.tanh %27 : vector<1x32xf32>
    %29 = arith.mulf %22, %28 : vector<1x32xf32>
    %c0_i32 = arith.constant 0 : i32
    %30 = vector.broadcast %c0_i32 : i32 to vector<8x32xi32>
    %31 = arith.cmpi eq, %0, %30 : vector<8x32xi32>
    %32 = vector.shape_cast %29 : vector<1x32xf32> to vector<1x32xf32>
    %33 = vector.broadcast %32 : vector<1x32xf32> to vector<8x32xf32>
    %34 = arith.select %31, %33, %10 : vector<8x32xi1>, vector<8x32xf32>
    %35 = vector.extract_strided_slice %6 {offsets = [1, 0], sizes = [1, 128], strides = [1, 1]} : vector<8x128xf32> to vector<1x128xf32>
    %cst_12 = arith.constant dense<0.000000e+00> : vector<1x128xf32>
    %36 = tpu.matmul %29, %7, %cst_12 {dimension_numbers = #tpu.dot_dimension_numbers<[1], [0], [0], [1], [0, 0, 1, 1], [], []>} : vector<1x32xf32>, vector<32x128xf32>, vector<1x128xf32> -> vector<1x128xf32>
    %37 = arith.addf %35, %36 : vector<1x128xf32>
    %38 = vector.extract_strided_slice %37 {offsets = [0, 0], sizes = [1, 96], strides = [1, 1]} : vector<1x128xf32> to vector<1x96xf32>
    %39 = arith.negf %38 : vector<1x96xf32>
    %40 = math.exp %39 : vector<1x96xf32>
    %cst_13 = arith.constant 1.000000e+00 : f32
    %41 = vector.broadcast %cst_13 : f32 to vector<1x96xf32>
    %42 = arith.addf %41, %40 : vector<1x96xf32>
    %43 = arith.divf %41, %42 : vector<1x96xf32>
    %44 = vector.extract_strided_slice %43 {offsets = [0, 0], sizes = [1, 32], strides = [1, 1]} : vector<1x96xf32> to vector<1x32xf32>
    %45 = vector.extract_strided_slice %43 {offsets = [0, 32], sizes = [1, 32], strides = [1, 1]} : vector<1x96xf32> to vector<1x32xf32>
    %46 = vector.extract_strided_slice %43 {offsets = [0, 64], sizes = [1, 32], strides = [1, 1]} : vector<1x96xf32> to vector<1x32xf32>
    %47 = vector.extract_strided_slice %37 {offsets = [0, 96], sizes = [1, 32], strides = [1, 1]} : vector<1x128xf32> to vector<1x32xf32>
    %48 = math.tanh %47 : vector<1x32xf32>
    %49 = arith.mulf %45, %27 : vector<1x32xf32>
    %50 = arith.mulf %44, %48 : vector<1x32xf32>
    %51 = arith.addf %49, %50 : vector<1x32xf32>
    %52 = math.tanh %51 : vector<1x32xf32>
    %53 = arith.mulf %46, %52 : vector<1x32xf32>
    %c1_i32 = arith.constant 1 : i32
    %54 = vector.broadcast %c1_i32 : i32 to vector<8x32xi32>
    %55 = arith.cmpi eq, %0, %54 : vector<8x32xi32>
    %56 = vector.shape_cast %53 : vector<1x32xf32> to vector<1x32xf32>
    %57 = vector.broadcast %56 : vector<1x32xf32> to vector<8x32xf32>
    %58 = arith.select %55, %57, %34 : vector<8x32xi1>, vector<8x32xf32>
    %59 = vector.extract_strided_slice %6 {offsets = [2, 0], sizes = [1, 128], strides = [1, 1]} : vector<8x128xf32> to vector<1x128xf32>
    %cst_14 = arith.constant dense<0.000000e+00> : vector<1x128xf32>
    %60 = tpu.matmul %53, %7, %cst_14 {dimension_numbers = #tpu.dot_dimension_numbers<[1], [0], [0], [1], [0, 0, 1, 1], [], []>} : vector<1x32xf32>, vector<32x128xf32>, vector<1x128xf32> -> vector<1x128xf32>
    %61 = arith.addf %59, %60 : vector<1x128xf32>
    %62 = vector.extract_strided_slice %61 {offsets = [0, 0], sizes = [1, 96], strides = [1, 1]} : vector<1x128xf32> to vector<1x96xf32>
    %63 = arith.negf %62 : vector<1x96xf32>
    %64 = math.exp %63 : vector<1x96xf32>
    %cst_15 = arith.constant 1.000000e+00 : f32
    %65 = vector.broadcast %cst_15 : f32 to vector<1x96xf32>
    %66 = arith.addf %65, %64 : vector<1x96xf32>
    %67 = arith.divf %65, %66 : vector<1x96xf32>
    %68 = vector.extract_strided_slice %67 {offsets = [0, 0], sizes = [1, 32], strides = [1, 1]} : vector<1x96xf32> to vector<1x32xf32>
    %69 = vector.extract_strided_slice %67 {offsets = [0, 32], sizes = [1, 32], strides = [1, 1]} : vector<1x96xf32> to vector<1x32xf32>
    %70 = vector.extract_strided_slice %67 {offsets = [0, 64], sizes = [1, 32], strides = [1, 1]} : vector<1x96xf32> to vector<1x32xf32>
    %71 = vector.extract_strided_slice %61 {offsets = [0, 96], sizes = [1, 32], strides = [1, 1]} : vector<1x128xf32> to vector<1x32xf32>
    %72 = math.tanh %71 : vector<1x32xf32>
    %73 = arith.mulf %69, %51 : vector<1x32xf32>
    %74 = arith.mulf %68, %72 : vector<1x32xf32>
    %75 = arith.addf %73, %74 : vector<1x32xf32>
    %76 = math.tanh %75 : vector<1x32xf32>
    %77 = arith.mulf %70, %76 : vector<1x32xf32>
    %c2_i32 = arith.constant 2 : i32
    %78 = vector.broadcast %c2_i32 : i32 to vector<8x32xi32>
    %79 = arith.cmpi eq, %0, %78 : vector<8x32xi32>
    %80 = vector.shape_cast %77 : vector<1x32xf32> to vector<1x32xf32>
    %81 = vector.broadcast %80 : vector<1x32xf32> to vector<8x32xf32>
    %82 = arith.select %79, %81, %58 : vector<8x32xi1>, vector<8x32xf32>
    %83 = vector.extract_strided_slice %6 {offsets = [3, 0], sizes = [1, 128], strides = [1, 1]} : vector<8x128xf32> to vector<1x128xf32>
    %cst_16 = arith.constant dense<0.000000e+00> : vector<1x128xf32>
    %84 = tpu.matmul %77, %7, %cst_16 {dimension_numbers = #tpu.dot_dimension_numbers<[1], [0], [0], [1], [0, 0, 1, 1], [], []>} : vector<1x32xf32>, vector<32x128xf32>, vector<1x128xf32> -> vector<1x128xf32>
    %85 = arith.addf %83, %84 : vector<1x128xf32>
    %86 = vector.extract_strided_slice %85 {offsets = [0, 0], sizes = [1, 96], strides = [1, 1]} : vector<1x128xf32> to vector<1x96xf32>
    %87 = arith.negf %86 : vector<1x96xf32>
    %88 = math.exp %87 : vector<1x96xf32>
    %cst_17 = arith.constant 1.000000e+00 : f32
    %89 = vector.broadcast %cst_17 : f32 to vector<1x96xf32>
    %90 = arith.addf %89, %88 : vector<1x96xf32>
    %91 = arith.divf %89, %90 : vector<1x96xf32>
    %92 = vector.extract_strided_slice %91 {offsets = [0, 0], sizes = [1, 32], strides = [1, 1]} : vector<1x96xf32> to vector<1x32xf32>
    %93 = vector.extract_strided_slice %91 {offsets = [0, 32], sizes = [1, 32], strides = [1, 1]} : vector<1x96xf32> to vector<1x32xf32>
    %94 = vector.extract_strided_slice %91 {offsets = [0, 64], sizes = [1, 32], strides = [1, 1]} : vector<1x96xf32> to vector<1x32xf32>
    %95 = vector.extract_strided_slice %85 {offsets = [0, 96], sizes = [1, 32], strides = [1, 1]} : vector<1x128xf32> to vector<1x32xf32>
    %96 = math.tanh %95 : vector<1x32xf32>
    %97 = arith.mulf %93, %75 : vector<1x32xf32>
    %98 = arith.mulf %92, %96 : vector<1x32xf32>
    %99 = arith.addf %97, %98 : vector<1x32xf32>
    %100 = math.tanh %99 : vector<1x32xf32>
    %101 = arith.mulf %94, %100 : vector<1x32xf32>
    %c3_i32 = arith.constant 3 : i32
    %102 = vector.broadcast %c3_i32 : i32 to vector<8x32xi32>
    %103 = arith.cmpi eq, %0, %102 : vector<8x32xi32>
    %104 = vector.shape_cast %101 : vector<1x32xf32> to vector<1x32xf32>
    %105 = vector.broadcast %104 : vector<1x32xf32> to vector<8x32xf32>
    %106 = arith.select %103, %105, %82 : vector<8x32xi1>, vector<8x32xf32>
    %107 = vector.extract_strided_slice %6 {offsets = [4, 0], sizes = [1, 128], strides = [1, 1]} : vector<8x128xf32> to vector<1x128xf32>
    %cst_18 = arith.constant dense<0.000000e+00> : vector<1x128xf32>
    %108 = tpu.matmul %101, %7, %cst_18 {dimension_numbers = #tpu.dot_dimension_numbers<[1], [0], [0], [1], [0, 0, 1, 1], [], []>} : vector<1x32xf32>, vector<32x128xf32>, vector<1x128xf32> -> vector<1x128xf32>
    %109 = arith.addf %107, %108 : vector<1x128xf32>
    %110 = vector.extract_strided_slice %109 {offsets = [0, 0], sizes = [1, 96], strides = [1, 1]} : vector<1x128xf32> to vector<1x96xf32>
    %111 = arith.negf %110 : vector<1x96xf32>
    %112 = math.exp %111 : vector<1x96xf32>
    %cst_19 = arith.constant 1.000000e+00 : f32
    %113 = vector.broadcast %cst_19 : f32 to vector<1x96xf32>
    %114 = arith.addf %113, %112 : vector<1x96xf32>
    %115 = arith.divf %113, %114 : vector<1x96xf32>
    %116 = vector.extract_strided_slice %115 {offsets = [0, 0], sizes = [1, 32], strides = [1, 1]} : vector<1x96xf32> to vector<1x32xf32>
    %117 = vector.extract_strided_slice %115 {offsets = [0, 32], sizes = [1, 32], strides = [1, 1]} : vector<1x96xf32> to vector<1x32xf32>
    %118 = vector.extract_strided_slice %115 {offsets = [0, 64], sizes = [1, 32], strides = [1, 1]} : vector<1x96xf32> to vector<1x32xf32>
    %119 = vector.extract_strided_slice %109 {offsets = [0, 96], sizes = [1, 32], strides = [1, 1]} : vector<1x128xf32> to vector<1x32xf32>
    %120 = math.tanh %119 : vector<1x32xf32>
    %121 = arith.mulf %117, %99 : vector<1x32xf32>
    %122 = arith.mulf %116, %120 : vector<1x32xf32>
    %123 = arith.addf %121, %122 : vector<1x32xf32>
    %124 = math.tanh %123 : vector<1x32xf32>
    %125 = arith.mulf %118, %124 : vector<1x32xf32>
    %c4_i32 = arith.constant 4 : i32
    %126 = vector.broadcast %c4_i32 : i32 to vector<8x32xi32>
    %127 = arith.cmpi eq, %0, %126 : vector<8x32xi32>
    %128 = vector.shape_cast %125 : vector<1x32xf32> to vector<1x32xf32>
    %129 = vector.broadcast %128 : vector<1x32xf32> to vector<8x32xf32>
    %130 = arith.select %127, %129, %106 : vector<8x32xi1>, vector<8x32xf32>
    %131 = vector.extract_strided_slice %6 {offsets = [5, 0], sizes = [1, 128], strides = [1, 1]} : vector<8x128xf32> to vector<1x128xf32>
    %cst_20 = arith.constant dense<0.000000e+00> : vector<1x128xf32>
    %132 = tpu.matmul %125, %7, %cst_20 {dimension_numbers = #tpu.dot_dimension_numbers<[1], [0], [0], [1], [0, 0, 1, 1], [], []>} : vector<1x32xf32>, vector<32x128xf32>, vector<1x128xf32> -> vector<1x128xf32>
    %133 = arith.addf %131, %132 : vector<1x128xf32>
    %134 = vector.extract_strided_slice %133 {offsets = [0, 0], sizes = [1, 96], strides = [1, 1]} : vector<1x128xf32> to vector<1x96xf32>
    %135 = arith.negf %134 : vector<1x96xf32>
    %136 = math.exp %135 : vector<1x96xf32>
    %cst_21 = arith.constant 1.000000e+00 : f32
    %137 = vector.broadcast %cst_21 : f32 to vector<1x96xf32>
    %138 = arith.addf %137, %136 : vector<1x96xf32>
    %139 = arith.divf %137, %138 : vector<1x96xf32>
    %140 = vector.extract_strided_slice %139 {offsets = [0, 0], sizes = [1, 32], strides = [1, 1]} : vector<1x96xf32> to vector<1x32xf32>
    %141 = vector.extract_strided_slice %139 {offsets = [0, 32], sizes = [1, 32], strides = [1, 1]} : vector<1x96xf32> to vector<1x32xf32>
    %142 = vector.extract_strided_slice %139 {offsets = [0, 64], sizes = [1, 32], strides = [1, 1]} : vector<1x96xf32> to vector<1x32xf32>
    %143 = vector.extract_strided_slice %133 {offsets = [0, 96], sizes = [1, 32], strides = [1, 1]} : vector<1x128xf32> to vector<1x32xf32>
    %144 = math.tanh %143 : vector<1x32xf32>
    %145 = arith.mulf %141, %123 : vector<1x32xf32>
    %146 = arith.mulf %140, %144 : vector<1x32xf32>
    %147 = arith.addf %145, %146 : vector<1x32xf32>
    %148 = math.tanh %147 : vector<1x32xf32>
    %149 = arith.mulf %142, %148 : vector<1x32xf32>
    %c5_i32 = arith.constant 5 : i32
    %150 = vector.broadcast %c5_i32 : i32 to vector<8x32xi32>
    %151 = arith.cmpi eq, %0, %150 : vector<8x32xi32>
    %152 = vector.shape_cast %149 : vector<1x32xf32> to vector<1x32xf32>
    %153 = vector.broadcast %152 : vector<1x32xf32> to vector<8x32xf32>
    %154 = arith.select %151, %153, %130 : vector<8x32xi1>, vector<8x32xf32>
    %155 = vector.extract_strided_slice %6 {offsets = [6, 0], sizes = [1, 128], strides = [1, 1]} : vector<8x128xf32> to vector<1x128xf32>
    %cst_22 = arith.constant dense<0.000000e+00> : vector<1x128xf32>
    %156 = tpu.matmul %149, %7, %cst_22 {dimension_numbers = #tpu.dot_dimension_numbers<[1], [0], [0], [1], [0, 0, 1, 1], [], []>} : vector<1x32xf32>, vector<32x128xf32>, vector<1x128xf32> -> vector<1x128xf32>
    %157 = arith.addf %155, %156 : vector<1x128xf32>
    %158 = vector.extract_strided_slice %157 {offsets = [0, 0], sizes = [1, 96], strides = [1, 1]} : vector<1x128xf32> to vector<1x96xf32>
    %159 = arith.negf %158 : vector<1x96xf32>
    %160 = math.exp %159 : vector<1x96xf32>
    %cst_23 = arith.constant 1.000000e+00 : f32
    %161 = vector.broadcast %cst_23 : f32 to vector<1x96xf32>
    %162 = arith.addf %161, %160 : vector<1x96xf32>
    %163 = arith.divf %161, %162 : vector<1x96xf32>
    %164 = vector.extract_strided_slice %163 {offsets = [0, 0], sizes = [1, 32], strides = [1, 1]} : vector<1x96xf32> to vector<1x32xf32>
    %165 = vector.extract_strided_slice %163 {offsets = [0, 32], sizes = [1, 32], strides = [1, 1]} : vector<1x96xf32> to vector<1x32xf32>
    %166 = vector.extract_strided_slice %163 {offsets = [0, 64], sizes = [1, 32], strides = [1, 1]} : vector<1x96xf32> to vector<1x32xf32>
    %167 = vector.extract_strided_slice %157 {offsets = [0, 96], sizes = [1, 32], strides = [1, 1]} : vector<1x128xf32> to vector<1x32xf32>
    %168 = math.tanh %167 : vector<1x32xf32>
    %169 = arith.mulf %165, %147 : vector<1x32xf32>
    %170 = arith.mulf %164, %168 : vector<1x32xf32>
    %171 = arith.addf %169, %170 : vector<1x32xf32>
    %172 = math.tanh %171 : vector<1x32xf32>
    %173 = arith.mulf %166, %172 : vector<1x32xf32>
    %c6_i32 = arith.constant 6 : i32
    %174 = vector.broadcast %c6_i32 : i32 to vector<8x32xi32>
    %175 = arith.cmpi eq, %0, %174 : vector<8x32xi32>
    %176 = vector.shape_cast %173 : vector<1x32xf32> to vector<1x32xf32>
    %177 = vector.broadcast %176 : vector<1x32xf32> to vector<8x32xf32>
    %178 = arith.select %175, %177, %154 : vector<8x32xi1>, vector<8x32xf32>
    %179 = vector.extract_strided_slice %6 {offsets = [7, 0], sizes = [1, 128], strides = [1, 1]} : vector<8x128xf32> to vector<1x128xf32>
    %cst_24 = arith.constant dense<0.000000e+00> : vector<1x128xf32>
    %180 = tpu.matmul %173, %7, %cst_24 {dimension_numbers = #tpu.dot_dimension_numbers<[1], [0], [0], [1], [0, 0, 1, 1], [], []>} : vector<1x32xf32>, vector<32x128xf32>, vector<1x128xf32> -> vector<1x128xf32>
    %181 = arith.addf %179, %180 : vector<1x128xf32>
    %182 = vector.extract_strided_slice %181 {offsets = [0, 0], sizes = [1, 96], strides = [1, 1]} : vector<1x128xf32> to vector<1x96xf32>
    %183 = arith.negf %182 : vector<1x96xf32>
    %184 = math.exp %183 : vector<1x96xf32>
    %cst_25 = arith.constant 1.000000e+00 : f32
    %185 = vector.broadcast %cst_25 : f32 to vector<1x96xf32>
    %186 = arith.addf %185, %184 : vector<1x96xf32>
    %187 = arith.divf %185, %186 : vector<1x96xf32>
    %188 = vector.extract_strided_slice %187 {offsets = [0, 0], sizes = [1, 32], strides = [1, 1]} : vector<1x96xf32> to vector<1x32xf32>
    %189 = vector.extract_strided_slice %187 {offsets = [0, 32], sizes = [1, 32], strides = [1, 1]} : vector<1x96xf32> to vector<1x32xf32>
    %190 = vector.extract_strided_slice %187 {offsets = [0, 64], sizes = [1, 32], strides = [1, 1]} : vector<1x96xf32> to vector<1x32xf32>
    %191 = vector.extract_strided_slice %181 {offsets = [0, 96], sizes = [1, 32], strides = [1, 1]} : vector<1x128xf32> to vector<1x32xf32>
    %192 = math.tanh %191 : vector<1x32xf32>
    %193 = arith.mulf %189, %171 : vector<1x32xf32>
    %194 = arith.mulf %188, %192 : vector<1x32xf32>
    %195 = arith.addf %193, %194 : vector<1x32xf32>
    %196 = math.tanh %195 : vector<1x32xf32>
    %197 = arith.mulf %190, %196 : vector<1x32xf32>
    %c7_i32 = arith.constant 7 : i32
    %198 = vector.broadcast %c7_i32 : i32 to vector<8x32xi32>
    %199 = arith.cmpi eq, %0, %198 : vector<8x32xi32>
    %200 = vector.shape_cast %197 : vector<1x32xf32> to vector<1x32xf32>
    %201 = vector.broadcast %200 : vector<1x32xf32> to vector<8x32xf32>
    %202 = arith.select %199, %201, %178 : vector<8x32xi1>, vector<8x32xf32>
    %c0_26 = arith.constant 0 : index
    %c0_27 = arith.constant 0 : index
    %203 = vector.load %arg4[%c0_26, %c0_27] : memref<32x128xf32, #tpu.memory_space<vmem>>, vector<32x128xf32>
    %cst_28 = arith.constant dense<0.000000e+00> : vector<8x128xf32>
    %204 = tpu.matmul %202, %203, %cst_28 {dimension_numbers = #tpu.dot_dimension_numbers<[1], [0], [0], [1], [0, 0, 1, 1], [], []>} : vector<8x32xf32>, vector<32x128xf32>, vector<8x128xf32> -> vector<8x128xf32>
    %c0_29 = arith.constant 0 : index
    %c0_30 = arith.constant 0 : index
    %205 = vector.load %arg6[%c0_29, %c0_30] : memref<1x128xf32, #tpu.memory_space<vmem>>, vector<1x128xf32>
    %206 = vector.broadcast %205 : vector<1x128xf32> to vector<8x128xf32>
    %207 = arith.addf %204, %206 : vector<8x128xf32>
    %c0_31 = arith.constant 0 : index
    %c0_32 = arith.constant 0 : index
    %208 = vector.load %arg5[%c0_31, %c0_32] : memref<32x128xf32, #tpu.memory_space<vmem>>, vector<32x128xf32>
    %cst_33 = arith.constant 0.000000e+00 : f32
    %209 = vector.broadcast %cst_33 : f32 to vector<1x32xf32>
    %cst_34 = arith.constant 0.000000e+00 : f32
    %210 = vector.broadcast %cst_34 : f32 to vector<1x32xf32>
    %cst_35 = arith.constant 0.000000e+00 : f32
    %211 = vector.broadcast %cst_35 : f32 to vector<8x32xf32>
    %212 = vector.extract_strided_slice %207 {offsets = [0, 0], sizes = [1, 128], strides = [1, 1]} : vector<8x128xf32> to vector<1x128xf32>
    %cst_36 = arith.constant dense<0.000000e+00> : vector<1x128xf32>
    %213 = tpu.matmul %209, %208, %cst_36 {dimension_numbers = #tpu.dot_dimension_numbers<[1], [0], [0], [1], [0, 0, 1, 1], [], []>} : vector<1x32xf32>, vector<32x128xf32>, vector<1x128xf32> -> vector<1x128xf32>
    %214 = arith.addf %212, %213 : vector<1x128xf32>
    %215 = vector.extract_strided_slice %214 {offsets = [0, 0], sizes = [1, 96], strides = [1, 1]} : vector<1x128xf32> to vector<1x96xf32>
    %216 = arith.negf %215 : vector<1x96xf32>
    %217 = math.exp %216 : vector<1x96xf32>
    %cst_37 = arith.constant 1.000000e+00 : f32
    %218 = vector.broadcast %cst_37 : f32 to vector<1x96xf32>
    %219 = arith.addf %218, %217 : vector<1x96xf32>
    %220 = arith.divf %218, %219 : vector<1x96xf32>
    %221 = vector.extract_strided_slice %220 {offsets = [0, 0], sizes = [1, 32], strides = [1, 1]} : vector<1x96xf32> to vector<1x32xf32>
    %222 = vector.extract_strided_slice %220 {offsets = [0, 32], sizes = [1, 32], strides = [1, 1]} : vector<1x96xf32> to vector<1x32xf32>
    %223 = vector.extract_strided_slice %220 {offsets = [0, 64], sizes = [1, 32], strides = [1, 1]} : vector<1x96xf32> to vector<1x32xf32>
    %224 = vector.extract_strided_slice %214 {offsets = [0, 96], sizes = [1, 32], strides = [1, 1]} : vector<1x128xf32> to vector<1x32xf32>
    %225 = math.tanh %224 : vector<1x32xf32>
    %226 = arith.mulf %222, %210 : vector<1x32xf32>
    %227 = arith.mulf %221, %225 : vector<1x32xf32>
    %228 = arith.addf %226, %227 : vector<1x32xf32>
    %229 = math.tanh %228 : vector<1x32xf32>
    %230 = arith.mulf %223, %229 : vector<1x32xf32>
    %c0_i32_38 = arith.constant 0 : i32
    %231 = vector.broadcast %c0_i32_38 : i32 to vector<8x32xi32>
    %232 = arith.cmpi eq, %0, %231 : vector<8x32xi32>
    %233 = vector.shape_cast %230 : vector<1x32xf32> to vector<1x32xf32>
    %234 = vector.broadcast %233 : vector<1x32xf32> to vector<8x32xf32>
    %235 = arith.select %232, %234, %211 : vector<8x32xi1>, vector<8x32xf32>
    %236 = vector.extract_strided_slice %207 {offsets = [1, 0], sizes = [1, 128], strides = [1, 1]} : vector<8x128xf32> to vector<1x128xf32>
    %cst_39 = arith.constant dense<0.000000e+00> : vector<1x128xf32>
    %237 = tpu.matmul %230, %208, %cst_39 {dimension_numbers = #tpu.dot_dimension_numbers<[1], [0], [0], [1], [0, 0, 1, 1], [], []>} : vector<1x32xf32>, vector<32x128xf32>, vector<1x128xf32> -> vector<1x128xf32>
    %238 = arith.addf %236, %237 : vector<1x128xf32>
    %239 = vector.extract_strided_slice %238 {offsets = [0, 0], sizes = [1, 96], strides = [1, 1]} : vector<1x128xf32> to vector<1x96xf32>
    %240 = arith.negf %239 : vector<1x96xf32>
    %241 = math.exp %240 : vector<1x96xf32>
    %cst_40 = arith.constant 1.000000e+00 : f32
    %242 = vector.broadcast %cst_40 : f32 to vector<1x96xf32>
    %243 = arith.addf %242, %241 : vector<1x96xf32>
    %244 = arith.divf %242, %243 : vector<1x96xf32>
    %245 = vector.extract_strided_slice %244 {offsets = [0, 0], sizes = [1, 32], strides = [1, 1]} : vector<1x96xf32> to vector<1x32xf32>
    %246 = vector.extract_strided_slice %244 {offsets = [0, 32], sizes = [1, 32], strides = [1, 1]} : vector<1x96xf32> to vector<1x32xf32>
    %247 = vector.extract_strided_slice %244 {offsets = [0, 64], sizes = [1, 32], strides = [1, 1]} : vector<1x96xf32> to vector<1x32xf32>
    %248 = vector.extract_strided_slice %238 {offsets = [0, 96], sizes = [1, 32], strides = [1, 1]} : vector<1x128xf32> to vector<1x32xf32>
    %249 = math.tanh %248 : vector<1x32xf32>
    %250 = arith.mulf %246, %228 : vector<1x32xf32>
    %251 = arith.mulf %245, %249 : vector<1x32xf32>
    %252 = arith.addf %250, %251 : vector<1x32xf32>
    %253 = math.tanh %252 : vector<1x32xf32>
    %254 = arith.mulf %247, %253 : vector<1x32xf32>
    %c1_i32_41 = arith.constant 1 : i32
    %255 = vector.broadcast %c1_i32_41 : i32 to vector<8x32xi32>
    %256 = arith.cmpi eq, %0, %255 : vector<8x32xi32>
    %257 = vector.shape_cast %254 : vector<1x32xf32> to vector<1x32xf32>
    %258 = vector.broadcast %257 : vector<1x32xf32> to vector<8x32xf32>
    %259 = arith.select %256, %258, %235 : vector<8x32xi1>, vector<8x32xf32>
    %260 = vector.extract_strided_slice %207 {offsets = [2, 0], sizes = [1, 128], strides = [1, 1]} : vector<8x128xf32> to vector<1x128xf32>
    %cst_42 = arith.constant dense<0.000000e+00> : vector<1x128xf32>
    %261 = tpu.matmul %254, %208, %cst_42 {dimension_numbers = #tpu.dot_dimension_numbers<[1], [0], [0], [1], [0, 0, 1, 1], [], []>} : vector<1x32xf32>, vector<32x128xf32>, vector<1x128xf32> -> vector<1x128xf32>
    %262 = arith.addf %260, %261 : vector<1x128xf32>
    %263 = vector.extract_strided_slice %262 {offsets = [0, 0], sizes = [1, 96], strides = [1, 1]} : vector<1x128xf32> to vector<1x96xf32>
    %264 = arith.negf %263 : vector<1x96xf32>
    %265 = math.exp %264 : vector<1x96xf32>
    %cst_43 = arith.constant 1.000000e+00 : f32
    %266 = vector.broadcast %cst_43 : f32 to vector<1x96xf32>
    %267 = arith.addf %266, %265 : vector<1x96xf32>
    %268 = arith.divf %266, %267 : vector<1x96xf32>
    %269 = vector.extract_strided_slice %268 {offsets = [0, 0], sizes = [1, 32], strides = [1, 1]} : vector<1x96xf32> to vector<1x32xf32>
    %270 = vector.extract_strided_slice %268 {offsets = [0, 32], sizes = [1, 32], strides = [1, 1]} : vector<1x96xf32> to vector<1x32xf32>
    %271 = vector.extract_strided_slice %268 {offsets = [0, 64], sizes = [1, 32], strides = [1, 1]} : vector<1x96xf32> to vector<1x32xf32>
    %272 = vector.extract_strided_slice %262 {offsets = [0, 96], sizes = [1, 32], strides = [1, 1]} : vector<1x128xf32> to vector<1x32xf32>
    %273 = math.tanh %272 : vector<1x32xf32>
    %274 = arith.mulf %270, %252 : vector<1x32xf32>
    %275 = arith.mulf %269, %273 : vector<1x32xf32>
    %276 = arith.addf %274, %275 : vector<1x32xf32>
    %277 = math.tanh %276 : vector<1x32xf32>
    %278 = arith.mulf %271, %277 : vector<1x32xf32>
    %c2_i32_44 = arith.constant 2 : i32
    %279 = vector.broadcast %c2_i32_44 : i32 to vector<8x32xi32>
    %280 = arith.cmpi eq, %0, %279 : vector<8x32xi32>
    %281 = vector.shape_cast %278 : vector<1x32xf32> to vector<1x32xf32>
    %282 = vector.broadcast %281 : vector<1x32xf32> to vector<8x32xf32>
    %283 = arith.select %280, %282, %259 : vector<8x32xi1>, vector<8x32xf32>
    %284 = vector.extract_strided_slice %207 {offsets = [3, 0], sizes = [1, 128], strides = [1, 1]} : vector<8x128xf32> to vector<1x128xf32>
    %cst_45 = arith.constant dense<0.000000e+00> : vector<1x128xf32>
    %285 = tpu.matmul %278, %208, %cst_45 {dimension_numbers = #tpu.dot_dimension_numbers<[1], [0], [0], [1], [0, 0, 1, 1], [], []>} : vector<1x32xf32>, vector<32x128xf32>, vector<1x128xf32> -> vector<1x128xf32>
    %286 = arith.addf %284, %285 : vector<1x128xf32>
    %287 = vector.extract_strided_slice %286 {offsets = [0, 0], sizes = [1, 96], strides = [1, 1]} : vector<1x128xf32> to vector<1x96xf32>
    %288 = arith.negf %287 : vector<1x96xf32>
    %289 = math.exp %288 : vector<1x96xf32>
    %cst_46 = arith.constant 1.000000e+00 : f32
    %290 = vector.broadcast %cst_46 : f32 to vector<1x96xf32>
    %291 = arith.addf %290, %289 : vector<1x96xf32>
    %292 = arith.divf %290, %291 : vector<1x96xf32>
    %293 = vector.extract_strided_slice %292 {offsets = [0, 0], sizes = [1, 32], strides = [1, 1]} : vector<1x96xf32> to vector<1x32xf32>
    %294 = vector.extract_strided_slice %292 {offsets = [0, 32], sizes = [1, 32], strides = [1, 1]} : vector<1x96xf32> to vector<1x32xf32>
    %295 = vector.extract_strided_slice %292 {offsets = [0, 64], sizes = [1, 32], strides = [1, 1]} : vector<1x96xf32> to vector<1x32xf32>
    %296 = vector.extract_strided_slice %286 {offsets = [0, 96], sizes = [1, 32], strides = [1, 1]} : vector<1x128xf32> to vector<1x32xf32>
    %297 = math.tanh %296 : vector<1x32xf32>
    %298 = arith.mulf %294, %276 : vector<1x32xf32>
    %299 = arith.mulf %293, %297 : vector<1x32xf32>
    %300 = arith.addf %298, %299 : vector<1x32xf32>
    %301 = math.tanh %300 : vector<1x32xf32>
    %302 = arith.mulf %295, %301 : vector<1x32xf32>
    %c3_i32_47 = arith.constant 3 : i32
    %303 = vector.broadcast %c3_i32_47 : i32 to vector<8x32xi32>
    %304 = arith.cmpi eq, %0, %303 : vector<8x32xi32>
    %305 = vector.shape_cast %302 : vector<1x32xf32> to vector<1x32xf32>
    %306 = vector.broadcast %305 : vector<1x32xf32> to vector<8x32xf32>
    %307 = arith.select %304, %306, %283 : vector<8x32xi1>, vector<8x32xf32>
    %308 = vector.extract_strided_slice %207 {offsets = [4, 0], sizes = [1, 128], strides = [1, 1]} : vector<8x128xf32> to vector<1x128xf32>
    %cst_48 = arith.constant dense<0.000000e+00> : vector<1x128xf32>
    %309 = tpu.matmul %302, %208, %cst_48 {dimension_numbers = #tpu.dot_dimension_numbers<[1], [0], [0], [1], [0, 0, 1, 1], [], []>} : vector<1x32xf32>, vector<32x128xf32>, vector<1x128xf32> -> vector<1x128xf32>
    %310 = arith.addf %308, %309 : vector<1x128xf32>
    %311 = vector.extract_strided_slice %310 {offsets = [0, 0], sizes = [1, 96], strides = [1, 1]} : vector<1x128xf32> to vector<1x96xf32>
    %312 = arith.negf %311 : vector<1x96xf32>
    %313 = math.exp %312 : vector<1x96xf32>
    %cst_49 = arith.constant 1.000000e+00 : f32
    %314 = vector.broadcast %cst_49 : f32 to vector<1x96xf32>
    %315 = arith.addf %314, %313 : vector<1x96xf32>
    %316 = arith.divf %314, %315 : vector<1x96xf32>
    %317 = vector.extract_strided_slice %316 {offsets = [0, 0], sizes = [1, 32], strides = [1, 1]} : vector<1x96xf32> to vector<1x32xf32>
    %318 = vector.extract_strided_slice %316 {offsets = [0, 32], sizes = [1, 32], strides = [1, 1]} : vector<1x96xf32> to vector<1x32xf32>
    %319 = vector.extract_strided_slice %316 {offsets = [0, 64], sizes = [1, 32], strides = [1, 1]} : vector<1x96xf32> to vector<1x32xf32>
    %320 = vector.extract_strided_slice %310 {offsets = [0, 96], sizes = [1, 32], strides = [1, 1]} : vector<1x128xf32> to vector<1x32xf32>
    %321 = math.tanh %320 : vector<1x32xf32>
    %322 = arith.mulf %318, %300 : vector<1x32xf32>
    %323 = arith.mulf %317, %321 : vector<1x32xf32>
    %324 = arith.addf %322, %323 : vector<1x32xf32>
    %325 = math.tanh %324 : vector<1x32xf32>
    %326 = arith.mulf %319, %325 : vector<1x32xf32>
    %c4_i32_50 = arith.constant 4 : i32
    %327 = vector.broadcast %c4_i32_50 : i32 to vector<8x32xi32>
    %328 = arith.cmpi eq, %0, %327 : vector<8x32xi32>
    %329 = vector.shape_cast %326 : vector<1x32xf32> to vector<1x32xf32>
    %330 = vector.broadcast %329 : vector<1x32xf32> to vector<8x32xf32>
    %331 = arith.select %328, %330, %307 : vector<8x32xi1>, vector<8x32xf32>
    %332 = vector.extract_strided_slice %207 {offsets = [5, 0], sizes = [1, 128], strides = [1, 1]} : vector<8x128xf32> to vector<1x128xf32>
    %cst_51 = arith.constant dense<0.000000e+00> : vector<1x128xf32>
    %333 = tpu.matmul %326, %208, %cst_51 {dimension_numbers = #tpu.dot_dimension_numbers<[1], [0], [0], [1], [0, 0, 1, 1], [], []>} : vector<1x32xf32>, vector<32x128xf32>, vector<1x128xf32> -> vector<1x128xf32>
    %334 = arith.addf %332, %333 : vector<1x128xf32>
    %335 = vector.extract_strided_slice %334 {offsets = [0, 0], sizes = [1, 96], strides = [1, 1]} : vector<1x128xf32> to vector<1x96xf32>
    %336 = arith.negf %335 : vector<1x96xf32>
    %337 = math.exp %336 : vector<1x96xf32>
    %cst_52 = arith.constant 1.000000e+00 : f32
    %338 = vector.broadcast %cst_52 : f32 to vector<1x96xf32>
    %339 = arith.addf %338, %337 : vector<1x96xf32>
    %340 = arith.divf %338, %339 : vector<1x96xf32>
    %341 = vector.extract_strided_slice %340 {offsets = [0, 0], sizes = [1, 32], strides = [1, 1]} : vector<1x96xf32> to vector<1x32xf32>
    %342 = vector.extract_strided_slice %340 {offsets = [0, 32], sizes = [1, 32], strides = [1, 1]} : vector<1x96xf32> to vector<1x32xf32>
    %343 = vector.extract_strided_slice %340 {offsets = [0, 64], sizes = [1, 32], strides = [1, 1]} : vector<1x96xf32> to vector<1x32xf32>
    %344 = vector.extract_strided_slice %334 {offsets = [0, 96], sizes = [1, 32], strides = [1, 1]} : vector<1x128xf32> to vector<1x32xf32>
    %345 = math.tanh %344 : vector<1x32xf32>
    %346 = arith.mulf %342, %324 : vector<1x32xf32>
    %347 = arith.mulf %341, %345 : vector<1x32xf32>
    %348 = arith.addf %346, %347 : vector<1x32xf32>
    %349 = math.tanh %348 : vector<1x32xf32>
    %350 = arith.mulf %343, %349 : vector<1x32xf32>
    %c5_i32_53 = arith.constant 5 : i32
    %351 = vector.broadcast %c5_i32_53 : i32 to vector<8x32xi32>
    %352 = arith.cmpi eq, %0, %351 : vector<8x32xi32>
    %353 = vector.shape_cast %350 : vector<1x32xf32> to vector<1x32xf32>
    %354 = vector.broadcast %353 : vector<1x32xf32> to vector<8x32xf32>
    %355 = arith.select %352, %354, %331 : vector<8x32xi1>, vector<8x32xf32>
    %356 = vector.extract_strided_slice %207 {offsets = [6, 0], sizes = [1, 128], strides = [1, 1]} : vector<8x128xf32> to vector<1x128xf32>
    %cst_54 = arith.constant dense<0.000000e+00> : vector<1x128xf32>
    %357 = tpu.matmul %350, %208, %cst_54 {dimension_numbers = #tpu.dot_dimension_numbers<[1], [0], [0], [1], [0, 0, 1, 1], [], []>} : vector<1x32xf32>, vector<32x128xf32>, vector<1x128xf32> -> vector<1x128xf32>
    %358 = arith.addf %356, %357 : vector<1x128xf32>
    %359 = vector.extract_strided_slice %358 {offsets = [0, 0], sizes = [1, 96], strides = [1, 1]} : vector<1x128xf32> to vector<1x96xf32>
    %360 = arith.negf %359 : vector<1x96xf32>
    %361 = math.exp %360 : vector<1x96xf32>
    %cst_55 = arith.constant 1.000000e+00 : f32
    %362 = vector.broadcast %cst_55 : f32 to vector<1x96xf32>
    %363 = arith.addf %362, %361 : vector<1x96xf32>
    %364 = arith.divf %362, %363 : vector<1x96xf32>
    %365 = vector.extract_strided_slice %364 {offsets = [0, 0], sizes = [1, 32], strides = [1, 1]} : vector<1x96xf32> to vector<1x32xf32>
    %366 = vector.extract_strided_slice %364 {offsets = [0, 32], sizes = [1, 32], strides = [1, 1]} : vector<1x96xf32> to vector<1x32xf32>
    %367 = vector.extract_strided_slice %364 {offsets = [0, 64], sizes = [1, 32], strides = [1, 1]} : vector<1x96xf32> to vector<1x32xf32>
    %368 = vector.extract_strided_slice %358 {offsets = [0, 96], sizes = [1, 32], strides = [1, 1]} : vector<1x128xf32> to vector<1x32xf32>
    %369 = math.tanh %368 : vector<1x32xf32>
    %370 = arith.mulf %366, %348 : vector<1x32xf32>
    %371 = arith.mulf %365, %369 : vector<1x32xf32>
    %372 = arith.addf %370, %371 : vector<1x32xf32>
    %373 = math.tanh %372 : vector<1x32xf32>
    %374 = arith.mulf %367, %373 : vector<1x32xf32>
    %c6_i32_56 = arith.constant 6 : i32
    %375 = vector.broadcast %c6_i32_56 : i32 to vector<8x32xi32>
    %376 = arith.cmpi eq, %0, %375 : vector<8x32xi32>
    %377 = vector.shape_cast %374 : vector<1x32xf32> to vector<1x32xf32>
    %378 = vector.broadcast %377 : vector<1x32xf32> to vector<8x32xf32>
    %379 = arith.select %376, %378, %355 : vector<8x32xi1>, vector<8x32xf32>
    %380 = vector.extract_strided_slice %207 {offsets = [7, 0], sizes = [1, 128], strides = [1, 1]} : vector<8x128xf32> to vector<1x128xf32>
    %cst_57 = arith.constant dense<0.000000e+00> : vector<1x128xf32>
    %381 = tpu.matmul %374, %208, %cst_57 {dimension_numbers = #tpu.dot_dimension_numbers<[1], [0], [0], [1], [0, 0, 1, 1], [], []>} : vector<1x32xf32>, vector<32x128xf32>, vector<1x128xf32> -> vector<1x128xf32>
    %382 = arith.addf %380, %381 : vector<1x128xf32>
    %383 = vector.extract_strided_slice %382 {offsets = [0, 0], sizes = [1, 96], strides = [1, 1]} : vector<1x128xf32> to vector<1x96xf32>
    %384 = arith.negf %383 : vector<1x96xf32>
    %385 = math.exp %384 : vector<1x96xf32>
    %cst_58 = arith.constant 1.000000e+00 : f32
    %386 = vector.broadcast %cst_58 : f32 to vector<1x96xf32>
    %387 = arith.addf %386, %385 : vector<1x96xf32>
    %388 = arith.divf %386, %387 : vector<1x96xf32>
    %389 = vector.extract_strided_slice %388 {offsets = [0, 0], sizes = [1, 32], strides = [1, 1]} : vector<1x96xf32> to vector<1x32xf32>
    %390 = vector.extract_strided_slice %388 {offsets = [0, 32], sizes = [1, 32], strides = [1, 1]} : vector<1x96xf32> to vector<1x32xf32>
    %391 = vector.extract_strided_slice %388 {offsets = [0, 64], sizes = [1, 32], strides = [1, 1]} : vector<1x96xf32> to vector<1x32xf32>
    %392 = vector.extract_strided_slice %382 {offsets = [0, 96], sizes = [1, 32], strides = [1, 1]} : vector<1x128xf32> to vector<1x32xf32>
    %393 = math.tanh %392 : vector<1x32xf32>
    %394 = arith.mulf %390, %372 : vector<1x32xf32>
    %395 = arith.mulf %389, %393 : vector<1x32xf32>
    %396 = arith.addf %394, %395 : vector<1x32xf32>
    %397 = math.tanh %396 : vector<1x32xf32>
    %398 = arith.mulf %391, %397 : vector<1x32xf32>
    %c7_i32_59 = arith.constant 7 : i32
    %399 = vector.broadcast %c7_i32_59 : i32 to vector<8x32xi32>
    %400 = arith.cmpi eq, %0, %399 : vector<8x32xi32>
    %401 = vector.shape_cast %398 : vector<1x32xf32> to vector<1x32xf32>
    %402 = vector.broadcast %401 : vector<1x32xf32> to vector<8x32xf32>
    %403 = arith.select %400, %402, %379 : vector<8x32xi1>, vector<8x32xf32>
    %cst_60 = arith.constant dense<0.000000e+00> : vector<32xf32>
    %404 = vector.multi_reduction <add>, %403, %cst_60 [0] : vector<8x32xf32> to vector<32xf32>
    %405 = vector.shape_cast %404 : vector<32xf32> to vector<1x32xf32>
    %406 = arith.mulf %403, %403 : vector<8x32xf32>
    %cst_61 = arith.constant dense<0.000000e+00> : vector<32xf32>
    %407 = vector.multi_reduction <add>, %406, %cst_61 [0] : vector<8x32xf32> to vector<32xf32>
    %408 = vector.shape_cast %407 : vector<32xf32> to vector<1x32xf32>
    %cst_62 = arith.constant 1.250000e-01 : f32
    %409 = vector.broadcast %cst_62 : f32 to vector<1x32xf32>
    %410 = arith.mulf %405, %409 : vector<1x32xf32>
    %cst_63 = arith.constant 1.250000e-01 : f32
    %411 = vector.broadcast %cst_63 : f32 to vector<1x32xf32>
    %412 = arith.mulf %408, %411 : vector<1x32xf32>
    %413 = arith.mulf %410, %410 : vector<1x32xf32>
    %414 = arith.subf %412, %413 : vector<1x32xf32>
    %c0_64 = arith.constant 0 : index
    %c0_65 = arith.constant 0 : index
    %415 = vector.load %arg7[%c0_64, %c0_65] : memref<1x32xf32, #tpu.memory_space<vmem>>, vector<1x32xf32>
    %cst_66 = arith.constant 9.99999974E-6 : f32
    %416 = vector.broadcast %cst_66 : f32 to vector<1x32xf32>
    %417 = arith.addf %414, %416 : vector<1x32xf32>
    %418 = math.rsqrt %417 : vector<1x32xf32>
    %419 = arith.mulf %415, %418 : vector<1x32xf32>
    %c0_67 = arith.constant 0 : index
    %c0_68 = arith.constant 0 : index
    %420 = vector.load %arg8[%c0_67, %c0_68] : memref<1x32xf32, #tpu.memory_space<vmem>>, vector<1x32xf32>
    %421 = arith.mulf %410, %419 : vector<1x32xf32>
    %422 = arith.subf %420, %421 : vector<1x32xf32>
    %423 = vector.broadcast %419 : vector<1x32xf32> to vector<8x32xf32>
    %424 = arith.mulf %403, %423 : vector<8x32xf32>
    %425 = vector.broadcast %422 : vector<1x32xf32> to vector<8x32xf32>
    %426 = arith.addf %424, %425 : vector<8x32xf32>
    %c0_69 = arith.constant 0 : index
    %c0_70 = arith.constant 0 : index
    %427 = vector.load %arg9[%c0_69, %c0_70] : memref<32x128xf32, #tpu.memory_space<vmem>>, vector<32x128xf32>
    %cst_71 = arith.constant dense<0.000000e+00> : vector<8x128xf32>
    %428 = tpu.matmul %426, %427, %cst_71 {dimension_numbers = #tpu.dot_dimension_numbers<[1], [0], [0], [1], [0, 0, 1, 1], [], []>} : vector<8x32xf32>, vector<32x128xf32>, vector<8x128xf32> -> vector<8x128xf32>
    %c0_72 = arith.constant 0 : index
    %c0_73 = arith.constant 0 : index
    %429 = vector.load %arg10[%c0_72, %c0_73] : memref<1x128xf32, #tpu.memory_space<vmem>>, vector<1x128xf32>
    %430 = vector.broadcast %429 : vector<1x128xf32> to vector<8x128xf32>
    %431 = arith.addf %428, %430 : vector<8x128xf32>
    %432 = math.tanh %431 : vector<8x128xf32>
    %c0_74 = arith.constant 0 : index
    %c0_75 = arith.constant 0 : index
    %433 = vector.load %arg11[%c0_74, %c0_75] : memref<8x128xf32, #tpu.memory_space<vmem>>, vector<8x128xf32>
    tpu.vector_store %arg11[%c0_74, %c0_75], %432 {strides = array<i32>} : memref<8x128xf32, #tpu.memory_space<vmem>>, vector<8x128xf32>,
    return
  }
}

</mosaic_0001>

<llo_original>
// kernel: tpu_custom_call.1
$region0: #{tpu_custom_call.1}
  #allocation0 [shape = 'u32[]', space=smem, size = 0x4, offset = 0x4, fixed_abs, tag = 'smem constant byte address 0x4 - core index']
  #allocation1 [shape = 'u32[144,128]{1,0:T(1,128)}', space=vmem, size = 0x12000, scoped, tag = 'internal scratch']
  %s0 = inlined_call_operand.hbm [shape: f32[8,16], index: 0, kind: input, shape index: {}]
  %s1 = inlined_call_operand.hbm [shape: f32[16,128], index: 1, kind: input, shape index: {}]
  %s2 = inlined_call_operand.hbm [shape: f32[32,128], index: 2, kind: input, shape index: {}]
  %s3 = inlined_call_operand.vmem [shape: f32[1,128], index: 3, kind: input, shape index: {}]
  %s4 = inlined_call_operand.hbm [shape: f32[32,128], index: 4, kind: input, shape index: {}]
  %s5 = inlined_call_operand.hbm [shape: f32[32,128], index: 5, kind: input, shape index: {}]
  %s6 = inlined_call_operand.vmem [shape: f32[1,128], index: 6, kind: input, shape index: {}]
  %s7 = inlined_call_operand.hbm [shape: f32[1,32], index: 7, kind: input, shape index: {}]
  %s8 = inlined_call_operand.hbm [shape: f32[1,32], index: 8, kind: input, shape index: {}]
  %s9 = inlined_call_operand.vmem [shape: f32[32,128], index: 9, kind: input, shape index: {}]
  %s10 = inlined_call_operand.vmem [shape: f32[1,128], index: 10, kind: input, shape index: {}]
  %s11 = inlined_call_operand.hbm [shape: f32[8,128], index: 11, kind: output, shape index: {}]
  %s12 = sld [smem:[#allocation0]]
  $region82: #{tpu_custom_call.1} parent=0
    _
  %s14 = ssub.s32 1, %s12
  %s15 = scalar_select 0, %s14, %s12
  $region1: #{tpu_custom_call.1} parent=0
    #allocation2 [shape = 'u8[4096]{0}', space=vmem, size = 0x1000, scoped, tag = 'input window, operand 0, single buffered']
    #allocation3 [shape = 's32[1]{0}', space=sflag, size = 0x4, scoped, tag = 'scoped memory for tpu_custom_call.1']
    #allocation4 [shape = 's32[1]{0}', space=sflag, size = 0x4, scoped, tag = 'scoped memory for tpu_custom_call.1']
    #allocation5 [shape = 'u8[8192]{0}', space=vmem, size = 0x2000, scoped, tag = 'input window, operand 1, single buffered']
    #allocation6 [shape = 's32[1]{0}', space=sflag, size = 0x4, scoped, tag = 'scoped memory for tpu_custom_call.1']
    #allocation7 [shape = 'u8[16384]{0}', space=vmem, size = 0x4000, scoped, tag = 'input window, operand 2, single buffered']
    #allocation8 [shape = 'u8[16384]{0}', space=vmem, size = 0x4000, scoped, tag = 'input window, operand 4, single buffered']
    #allocation9 [shape = 's32[1]{0}', space=sflag, size = 0x4, scoped, tag = 'scoped memory for tpu_custom_call.1']
    #allocation10 [shape = 'u8[16384]{0}', space=vmem, size = 0x4000, scoped, tag = 'input window, operand 5, single buffered']
    #allocation11 [shape = 'u8[512]{0}', space=vmem, size = 0x400, scoped, tag = 'input window, operand 7, single buffered']
    #allocation12 [shape = 's32[1]{0}', space=sflag, size = 0x4, scoped, tag = 'scoped memory for tpu_custom_call.1']
    #allocation13 [shape = 'u8[512]{0}', space=vmem, size = 0x400, scoped, tag = 'input window, operand 8, single buffered']
    #allocation14 [shape = 'u8[4096]{0}', space=vmem, size = 0x1000, scoped, tag = 'output window, operand 0, single buffered']
    %16 = vsyncpa [#allocation3], 0
    %17 = vsyncpa [#allocation6], 0
    %18 = vsyncpa [#allocation9], 0
    %19 = vsyncpa [#allocation12], 0
    %20 = vsyncpa [#allocation4], 0
    // Predicated region
    $region2: #{tpu_custom_call.1} parent=1 // pred_check
      _
    $region3: #{tpu_custom_call.1} parent=1 // pred_check_branch
      %22 = sbr.rel (0) target = $region5
    $region4: #{tpu_custom_call.1} parent=1 // pred_region
      %s24 = ssub.s32 128, 128
      %25 = vsyncadd [#allocation3], %s24
      %s27 = sshll.u32 [#allocation2], 4
      %s28 = int_to_ptr.vmem [resolvable:$true] %s27
      %30 = dma.hbm_to_vmem [thread:$0]  %s0, 128, %s28, [#allocation3]
    $region5: #{tpu_custom_call.1} parent=1 // pred_fallthru
      _
    // Predicated region
    $region6: #{tpu_custom_call.1} parent=1 // pred_check
      _
    $region7: #{tpu_custom_call.1} parent=1 // pred_check_branch
      %32 = sbr.rel (0) target = $region9
    $region8: #{tpu_custom_call.1} parent=1 // pred_region
      %s34 = ssub.s32 256, 256
      %35 = vsyncadd [#allocation6], %s34
      %s36 = sshll.u32 [#allocation5], 4
      %s37 = int_to_ptr.vmem [resolvable:$true] %s36
      %42 = dma.hbm_to_vmem [thread:$0]  %s1, 256, %s37, [#allocation6], 128, 128, 8
    $region9: #{tpu_custom_call.1} parent=1 // pred_fallthru
      _
    // Predicated region
    $region10: #{tpu_custom_call.1} parent=1 // pred_check
      _
    $region11: #{tpu_custom_call.1} parent=1 // pred_check_branch
      %44 = sbr.rel (0) target = $region13
    $region12: #{tpu_custom_call.1} parent=1 // pred_region
      %s46 = ssub.s32 512, 512
      %47 = vsyncadd [#allocation6], %s46
      %s48 = sshll.u32 [#allocation7], 4
      %s49 = int_to_ptr.vmem [resolvable:$true] %s48
      %54 = dma.hbm_to_vmem [thread:$0]  %s2, 512, %s49, [#allocation6], 128, 128, 8
    $region13: #{tpu_custom_call.1} parent=1 // pred_fallthru
      _
    // Predicated region
    $region14: #{tpu_custom_call.1} parent=1 // pred_check
      _
    $region15: #{tpu_custom_call.1} parent=1 // pred_check_branch
      %56 = sbr.rel (0) target = $region17
    $region16: #{tpu_custom_call.1} parent=1 // pred_region
      _
    $region17: #{tpu_custom_call.1} parent=1 // pred_fallthru
      _
    // Predicated region
    $region18: #{tpu_custom_call.1} parent=1 // pred_check
      _
    $region19: #{tpu_custom_call.1} parent=1 // pred_check_branch
      %58 = sbr.rel (0) target = $region21
    $region20: #{tpu_custom_call.1} parent=1 // pred_region
      %s60 = ssub.s32 512, 512
      %61 = vsyncadd [#allocation9], %s60
      %s62 = sshll.u32 [#allocation8], 4
      %s63 = int_to_ptr.vmem [resolvable:$true] %s62
      %68 = dma.hbm_to_vmem [thread:$0]  %s4, 512, %s63, [#allocation9], 128, 128, 8
    $region21: #{tpu_custom_call.1} parent=1 // pred_fallthru
      _
    // Predicated region
    $region22: #{tpu_custom_call.1} parent=1 // pred_check
      _
    $region23: #{tpu_custom_call.1} parent=1 // pred_check_branch
      %70 = sbr.rel (0) target = $region25
    $region24: #{tpu_custom_call.1} parent=1 // pred_region
      %s72 = ssub.s32 512, 512
      %73 = vsyncadd [#allocation9], %s72
      %s74 = sshll.u32 [#allocation10], 4
      %s75 = int_to_ptr.vmem [resolvable:$true] %s74
      %80 = dma.hbm_to_vmem [thread:$0]  %s5, 512, %s75, [#allocation9], 128, 128, 8
    $region25: #{tpu_custom_call.1} parent=1 // pred_fallthru
      _
    // Predicated region
    $region26: #{tpu_custom_call.1} parent=1 // pred_check
      _
    $region27: #{tpu_custom_call.1} parent=1 // pred_check_branch
      %82 = sbr.rel (0) target = $region29
    $region28: #{tpu_custom_call.1} parent=1 // pred_region
      _
    $region29: #{tpu_custom_call.1} parent=1 // pred_fallthru
      _
    // Predicated region
    $region30: #{tpu_custom_call.1} parent=1 // pred_check
      _
    $region31: #{tpu_custom_call.1} parent=1 // pred_check_branch
      %84 = sbr.rel (0) target = $region33
    $region32: #{tpu_custom_call.1} parent=1 // pred_region
      %s86 = ssub.s32 16, 16
      %87 = vsyncadd [#allocation12], %s86
      %s89 = sshll.u32 [#allocation11], 4
      %s90 = int_to_ptr.vmem [resolvable:$true] %s89
      %92 = dma.hbm_to_vmem [thread:$0]  %s7, 16, %s90, [#allocation12]
    $region33: #{tpu_custom_call.1} parent=1 // pred_fallthru
      _
    // Predicated region
    $region34: #{tpu_custom_call.1} parent=1 // pred_check
      _
    $region35: #{tpu_custom_call.1} parent=1 // pred_check_branch
      %94 = sbr.rel (0) target = $region37
    $region36: #{tpu_custom_call.1} parent=1 // pred_region
      %s96 = ssub.s32 16, 16
      %97 = vsyncadd [#allocation12], %s96
      %s99 = sshll.u32 [#allocation13], 4
      %s100 = int_to_ptr.vmem [resolvable:$true] %s99
      %102 = dma.hbm_to_vmem [thread:$0]  %s8, 16, %s100, [#allocation12]
    $region37: #{tpu_custom_call.1} parent=1 // pred_fallthru
      _
    // Predicated region
    $region38: #{tpu_custom_call.1} parent=1 // pred_check
      _
    $region39: #{tpu_custom_call.1} parent=1 // pred_check_branch
      %104 = sbr.rel (0) target = $region41
    $region40: #{tpu_custom_call.1} parent=1 // pred_region
      _
    $region41: #{tpu_custom_call.1} parent=1 // pred_fallthru
      _
    // Predicated region
    $region42: #{tpu_custom_call.1} parent=1 // pred_check
      _
    $region43: #{tpu_custom_call.1} parent=1 // pred_check_branch
      %106 = sbr.rel (0) target = $region45
    $region44: #{tpu_custom_call.1} parent=1 // pred_region
      _
    $region45: #{tpu_custom_call.1} parent=1 // pred_fallthru
      _
    // Predicated region
    $region46: #{tpu_custom_call.1} parent=1 // pred_check
      _
    $region47: #{tpu_custom_call.1} parent=1 // pred_check_branch
      %108 = sbr.rel (0) target = $region49
    $region48: #{tpu_custom_call.1} parent=1 // pred_region
      %109 = dma.done [#allocation3], 128
    $region49: #{tpu_custom_call.1} parent=1 // pred_fallthru
      _
    // Predicated region
    $region50: #{tpu_custom_call.1} parent=1 // pred_check
      _
    $region51: #{tpu_custom_call.1} parent=1 // pred_check_branch
      %111 = sbr.rel (0) target = $region53
    $region52: #{tpu_custom_call.1} parent=1 // pred_region
      %112 = dma.done [#allocation6], 256
    $region53: #{tpu_custom_call.1} parent=1 // pred_fallthru
      _
    // Predicated region
    $region54: #{tpu_custom_call.1} parent=1 // pred_check
      _
    $region55: #{tpu_custom_call.1} parent=1 // pred_check_branch
      %114 = sbr.rel (0) target = $region57
    $region56: #{tpu_custom_call.1} parent=1 // pred_region
      %115 = dma.done [#allocation6], 512
    $region57: #{tpu_custom_call.1} parent=1 // pred_fallthru
      _
    // Predicated region
    $region58: #{tpu_custom_call.1} parent=1 // pred_check
      _
    $region59: #{tpu_custom_call.1} parent=1 // pred_check_branch
      %117 = sbr.rel (0) target = $region61
    $region60: #{tpu_custom_call.1} parent=1 // pred_region
      %118 = dma.done [#allocation9], 512
    $region61: #{tpu_custom_call.1} parent=1 // pred_fallthru
      _
    // Predicated region
    $region62: #{tpu_custom_call.1} parent=1 // pred_check
      _
    $region63: #{tpu_custom_call.1} parent=1 // pred_check_branch
      %120 = sbr.rel (0) target = $region65
    $region64: #{tpu_custom_call.1} parent=1 // pred_region
      %121 = dma.done [#allocation9], 512
    $region65: #{tpu_custom_call.1} parent=1 // pred_fallthru
      _
    // Predicated region
    $region66: #{tpu_custom_call.1} parent=1 // pred_check
      _
    $region67: #{tpu_custom_call.1} parent=1 // pred_check_branch
      %123 = sbr.rel (0) target = $region69
    $region68: #{tpu_custom_call.1} parent=1 // pred_region
      %124 = dma.done [#allocation12], 16
    $region69: #{tpu_custom_call.1} parent=1 // pred_fallthru
      _
    // Predicated region
    $region70: #{tpu_custom_call.1} parent=1 // pred_check
      _
    $region71: #{tpu_custom_call.1} parent=1 // pred_check_branch
      %126 = sbr.rel (0) target = $region73
    $region72: #{tpu_custom_call.1} parent=1 // pred_region
      %127 = dma.done [#allocation12], 16
    $region73: #{tpu_custom_call.1} parent=1 // pred_fallthru
      _
    %v128 = vlaneseq
    %v129 = vshrl.u32 %v128, 7
    %v130 = vld [vmem:[#allocation2] sm:$0xff]
    %v131 = vld [vmem:[#allocation5] sm:$0xff]
    %v132 = vld [vmem:[#allocation5 + $0x8] sm:$0xff]
    %v133 = vld [vmem:[%s3] sm:$0x1]
    %v135 = vlaneseq
    %v136 = vshrl.u32 %v135, 7
    %v137 = vsub.s32 0, %v136
    %v138 = vrot.slane %v133, %v137
    %vm140 = vcmask 130048
    %v142 = vsel %vm140, %v130, 0
    %144 = vmatprep.subr.mxu0 0.0
    %145 = vmatpush1.msra.mxu0 %v131
    %146 = vmatprep.subr.mxu0 0.0
    %147 = vmatpush1.msra.mxu0 %v132
    %148 = vmatprep.subr.mxu0 0.0
    %149 = vmatpush1.msra.mxu0 0.0
    %150 = vmatprep.subr.mxu0 0.0
    %151 = vmatpush1.msra.mxu0 0.0
    %152 = vmatprep.subr.mxu0 0.0
    %153 = vmatpush1.msra.mxu0 0.0
    %154 = vmatprep.subr.mxu0 0.0
    %155 = vmatpush1.msra.mxu0 0.0
    %156 = vmatprep.subr.mxu0 0.0
    %157 = vmatpush1.msra.mxu0 0.0
    %158 = vmatprep.subr.mxu0 0.0
    %159 = vmatpush1.msra.mxu0 0.0
    %160 = vmatprep.subr.mxu0 0.0
    %161 = vmatpush1.msra.mxu0 0.0
    %162 = vmatprep.subr.mxu0 0.0
    %163 = vmatpush1.msra.mxu0 0.0
    %164 = vmatprep.subr.mxu0 0.0
    %165 = vmatpush1.msra.mxu0 0.0
    %166 = vmatprep.subr.mxu0 0.0
    %167 = vmatpush1.msra.mxu0 0.0
    %168 = vmatprep.subr.mxu0 0.0
    %169 = vmatpush1.msra.mxu0 0.0
    %170 = vmatprep.subr.mxu0 0.0
    %171 = vmatpush1.msra.mxu0 0.0
    %172 = vmatprep.subr.mxu0 0.0
    %173 = vmatpush1.msra.mxu0 0.0
    %174 = vmatprep.subr.mxu0 0.0
    %175 = vmatpush1.msra.mxu0 0.0
    %176 = vmatprep.subr.mxu0 0.0
    %177 = vmatpush1.msra.mxu0 0.0
    %178 = vmatprep.subr.mxu0 0.0
    %179 = vmatpush1.msra.mxu0 0.0
    %180 = vmatprep.subr.mxu0 0.0
    %181 = vmatpush1.msra.mxu0 0.0
    %182 = vmatprep.subr.mxu0 0.0
    %183 = vmatpush1.msra.mxu0 0.0
    %184 = vmatprep.subr.mxu0 0.0
    %185 = vmatpush1.msra.mxu0 0.0
    %186 = vmatprep.subr.mxu0 0.0
    %187 = vmatpush1.msra.mxu0 0.0
    %188 = vmatprep.subr.mxu0 0.0
    %189 = vmatpush1.msra.mxu0 0.0
    %190 = vmatprep.subr.mxu0 0.0
    %191 = vmatpush1.msra.mxu0 0.0
    %192 = vmatprep.subr.mxu0 0.0
    %193 = vmatpush1.msra.mxu0 0.0
    %194 = vmatprep.subr.mxu0 0.0
    %195 = vmatpush1.msra.mxu0 0.0
    %196 = vmatprep.subr.mxu0 0.0
    %197 = vmatpush1.msra.mxu0 0.0
    %198 = vmatprep.subr.mxu0 0.0
    %199 = vmatpush1.msra.mxu0 0.0
    %200 = vmatprep.subr.mxu0 0.0
    %201 = vmatpush1.msra.mxu0 0.0
    %202 = vmatprep.subr.mxu0 0.0
    %203 = vmatpush1.msra.mxu0 0.0
    %204 = vmatprep.subr.mxu0 0.0
    %205 = vmatpush1.msra.mxu0 0.0
    %206 = vmatprep.subr.mxu0 0.0
    %207 = vmatpush1.msra.mxu0 0.0
    %208 = vmatprep.mubr.f32.mxu0 0.0
    %209 = vmatmul.mubr.f32.gmra.mrb[0].mxu0 %v142
    %v210 = vpop.f32.mrb[0].mxu0
    %v211 = vadd.f32 %v138, %v210
    %v212 = vpop.f32.mrb[0].mxu0
    %213 = vdwg.mxu0
    %v214 = vld [vmem:[#allocation7] sm:$0xff]
    %v215 = vld [vmem:[#allocation7 + $0x8] sm:$0xff]
    %v216 = vld [vmem:[#allocation7 + $0x10] sm:$0xff]
    %v217 = vld [vmem:[#allocation7 + $0x18] sm:$0xff]
    %vm218 = vcmask 261120
    %v220 = vsel %vm218, 0.0, 0
    %222 = vmatprep.subr.mxu0 0.0
    %223 = vmatpush1.msra.mxu0 %v214
    %224 = vmatprep.subr.mxu0 0.0
    %225 = vmatpush1.msra.mxu0 %v215
    %226 = vmatprep.subr.mxu0 0.0
    %227 = vmatpush1.msra.mxu0 %v216
    %228 = vmatprep.subr.mxu0 0.0
    %229 = vmatpush1.msra.mxu0 %v217
    %230 = vmatprep.subr.mxu0 0.0
    %231 = vmatpush1.msra.mxu0 0.0
    %232 = vmatprep.subr.mxu0 0.0
    %233 = vmatpush1.msra.mxu0 0.0
    %234 = vmatprep.subr.mxu0 0.0
    %235 = vmatpush1.msra.mxu0 0.0
    %236 = vmatprep.subr.mxu0 0.0
    %237 = vmatpush1.msra.mxu0 0.0
    %238 = vmatprep.subr.mxu0 0.0
    %239 = vmatpush1.msra.mxu0 0.0
    %240 = vmatprep.subr.mxu0 0.0
    %241 = vmatpush1.msra.mxu0 0.0
    %242 = vmatprep.subr.mxu0 0.0
    %243 = vmatpush1.msra.mxu0 0.0
    %244 = vmatprep.subr.mxu0 0.0
    %245 = vmatpush1.msra.mxu0 0.0
    %246 = vmatprep.subr.mxu0 0.0
    %247 = vmatpush1.msra.mxu0 0.0
    %248 = vmatprep.subr.mxu0 0.0
    %249 = vmatpush1.msra.mxu0 0.0
    %250 = vmatprep.subr.mxu0 0.0
    %251 = vmatpush1.msra.mxu0 0.0
    %252 = vmatprep.subr.mxu0 0.0
    %253 = vmatpush1.msra.mxu0 0.0
    %254 = vmatprep.subr.mxu0 0.0
    %255 = vmatpush1.msra.mxu0 0.0
    %256 = vmatprep.subr.mxu0 0.0
    %257 = vmatpush1.msra.mxu0 0.0
    %258 = vmatprep.subr.mxu0 0.0
    %259 = vmatpush1.msra.mxu0 0.0
    %260 = vmatprep.subr.mxu0 0.0
    %261 = vmatpush1.msra.mxu0 0.0
    %262 = vmatprep.subr.mxu0 0.0
    %263 = vmatpush1.msra.mxu0 0.0
    %264 = vmatprep.subr.mxu0 0.0
    %265 = vmatpush1.msra.mxu0 0.0
    %266 = vmatprep.subr.mxu0 0.0
    %267 = vmatpush1.msra.mxu0 0.0
    %268 = vmatprep.subr.mxu0 0.0
    %269 = vmatpush1.msra.mxu0 0.0
    %270 = vmatprep.subr.mxu0 0.0
    %271 = vmatpush1.msra.mxu0 0.0
    %272 = vmatprep.subr.mxu0 0.0
    %273 = vmatpush1.msra.mxu0 0.0
    %274 = vmatprep.subr.mxu0 0.0
    %275 = vmatpush1.msra.mxu0 0.0
    %276 = vmatprep.subr.mxu0 0.0
    %277 = vmatpush1.msra.mxu0 0.0
    %278 = vmatprep.subr.mxu0 0.0
    %279 = vmatpush1.msra.mxu0 0.0
    %280 = vmatprep.subr.mxu0 0.0
    %281 = vmatpush1.msra.mxu0 0.0
    %282 = vmatprep.subr.mxu0 0.0
    %283 = vmatpush1.msra.mxu0 0.0
    %284 = vmatprep.subr.mxu0 0.0
    %285 = vmatpush1.msra.mxu0 0.0
    %286 = vmatprep.mubr.f32.mxu0 0.0
    %287 = vmatmul.mubr.f32.gmra.mrb[0].mxu0 %v220
    %v288 = vpop.f32.mrb[0].mxu0
    %v289 = vadd.f32 0.0, %v288
    %v290 = vpop.f32.mrb[0].mxu0
    %291 = vdwg.mxu0
    %v292 = vadd.f32 %v211, %v289
    %v293 = vxor.u32 %v292, 2147483648
    %v294 = vmul.f32 %v293, 1.442695
    %v295 = vpow.pop %v294
    %v296 = vadd.f32 %v295, 1.0
    %v297 = vrcp.pop %v296
    %v298 = vmul.f32 1.0, %v297
    %v299 = vtanh.pop %v292
    %v300 = vmul.f32 %v298, 0.0
    %302 = vrot.lane.b32.xlu0 %v299, 32
    %v303 = vpop.permute.xlu0 %302
    %v305 = vmul.f32 %v298, %v303
    %307 = vrot.lane.b32.xlu0 %v305, 32
    %v308 = vpop.permute.xlu0 %307
    %v310 = vadd.f32 %v300, %v308
    %v311 = vtanh.pop %v310
    %313 = vrot.lane.b32.xlu0 %v311, 32
    %v314 = vpop.permute.xlu0 %313
    %v316 = vmul.f32 %v298, %v314
    %vm317 = vcmp.eq.s32.totalorder %v129, 0
    %v318 = vlaneseq
    %v319 = vshrl.u32 %v318, 7
    %v320 = vsub.s32 0, %v319
    %v321 = vrot.slane %v316, %v320
    %v322 = vsel %vm317, %v321, 0.0
    %324 = vrot.lane.b32.xlu0 %v316, 64
    %v325 = vpop.permute.xlu0 %324
    %v326 = vsel %vm218, %v325, 0
    %328 = vmatprep.subr.mxu0 0.0
    %329 = vmatpush1.msra.mxu0 %v214
    %330 = vmatprep.subr.mxu0 0.0
    %331 = vmatpush1.msra.mxu0 %v215
    %332 = vmatprep.subr.mxu0 0.0
    %333 = vmatpush1.msra.mxu0 %v216
    %334 = vmatprep.subr.mxu0 0.0
    %335 = vmatpush1.msra.mxu0 %v217
    %336 = vmatprep.subr.mxu0 0.0
    %337 = vmatpush1.msra.mxu0 0.0
    %338 = vmatprep.subr.mxu0 0.0
    %339 = vmatpush1.msra.mxu0 0.0
    %340 = vmatprep.subr.mxu0 0.0
    %341 = vmatpush1.msra.mxu0 0.0
    %342 = vmatprep.subr.mxu0 0.0
    %343 = vmatpush1.msra.mxu0 0.0
    %344 = vmatprep.subr.mxu0 0.0
    %345 = vmatpush1.msra.mxu0 0.0
    %346 = vmatprep.subr.mxu0 0.0
    %347 = vmatpush1.msra.mxu0 0.0
    %348 = vmatprep.subr.mxu0 0.0
    %349 = vmatpush1.msra.mxu0 0.0
    %350 = vmatprep.subr.mxu0 0.0
    %351 = vmatpush1.msra.mxu0 0.0
    %352 = vmatprep.subr.mxu0 0.0
    %353 = vmatpush1.msra.mxu0 0.0
    %354 = vmatprep.subr.mxu0 0.0
    %355 = vmatpush1.msra.mxu0 0.0
    %356 = vmatprep.subr.mxu0 0.0
    %357 = vmatpush1.msra.mxu0 0.0
    %358 = vmatprep.subr.mxu0 0.0
    %359 = vmatpush1.msra.mxu0 0.0
    %360 = vmatprep.subr.mxu0 0.0
    %361 = vmatpush1.msra.mxu0 0.0
    %362 = vmatprep.subr.mxu0 0.0
    %363 = vmatpush1.msra.mxu0 0.0
    %364 = vmatprep.subr.mxu0 0.0
    %365 = vmatpush1.msra.mxu0 0.0
    %366 = vmatprep.subr.mxu0 0.0
    %367 = vmatpush1.msra.mxu0 0.0
    %368 = vmatprep.subr.mxu0 0.0
    %369 = vmatpush1.msra.mxu0 0.0
    %370 = vmatprep.subr.mxu0 0.0
    %371 = vmatpush1.msra.mxu0 0.0
    %372 = vmatprep.subr.mxu0 0.0
    %373 = vmatpush1.msra.mxu0 0.0
    %374 = vmatprep.subr.mxu0 0.0
    %375 = vmatpush1.msra.mxu0 0.0
    %376 = vmatprep.subr.mxu0 0.0
    %377 = vmatpush1.msra.mxu0 0.0
    %378 = vmatprep.subr.mxu0 0.0
    %379 = vmatpush1.msra.mxu0 0.0
    %380 = vmatprep.subr.mxu0 0.0
    %381 = vmatpush1.msra.mxu0 0.0
    %382 = vmatprep.subr.mxu0 0.0
    %383 = vmatpush1.msra.mxu0 0.0
    %384 = vmatprep.subr.mxu0 0.0
    %385 = vmatpush1.msra.mxu0 0.0
    %386 = vmatprep.subr.mxu0 0.0
    %387 = vmatpush1.msra.mxu0 0.0
    %388 = vmatprep.subr.mxu0 0.0
    %389 = vmatpush1.msra.mxu0 0.0
    %390 = vmatprep.subr.mxu0 0.0
    %391 = vmatpush1.msra.mxu0 0.0
    %392 = vmatprep.mubr.f32.mxu0 0.0
    %393 = vmatmul.mubr.f32.gmra.mrb[0].mxu0 %v326
    %v394 = vpop.f32.mrb[0].mxu0
    %v395 = vadd.f32 0.0, %v394
    %v396 = vpop.f32.mrb[0].mxu0
    %397 = vdwg.mxu0
    %v399 = vrot.slane %v395, 7
    %v401 = vadd.f32 %v211, %v399
    %v402 = vxor.u32 %v401, 2147483648
    %v403 = vmul.f32 %v402, 1.442695
    %v404 = vpow.pop %v403
    %v405 = vadd.f32 %v404, 1.0
    %v406 = vrcp.pop %v405
    %v407 = vmul.f32 1.0, %v406
    %v408 = vtanh.pop %v401
    %v410 = vrot.slane %v310, 7
    %v412 = vmul.f32 %v407, %v410
    %414 = vrot.lane.b32.xlu0 %v408, 32
    %v415 = vpop.permute.xlu0 %414
    %v417 = vmul.f32 %v407, %v415
    %419 = vrot.lane.b32.xlu0 %v417, 32
    %v420 = vpop.permute.xlu0 %419
    %v422 = vadd.f32 %v412, %v420
    %v423 = vtanh.pop %v422
    %425 = vrot.lane.b32.xlu0 %v423, 32
    %v426 = vpop.permute.xlu0 %425
    %v428 = vmul.f32 %v407, %v426
    %vm429 = vcmp.eq.s32.totalorder %v129, 1
    %v430 = vlaneseq
    %v431 = vshrl.u32 %v430, 7
    %v432 = vsub.s32 1, %v431
    %v433 = vrot.slane %v428, %v432
    %v434 = vsel %vm429, %v433, %v322
    %v436 = vrot.slane %v428, 1
    %437 = vrot.lane.b32.xlu0 %v436, 64
    %v438 = vpop.permute.xlu0 %437
    %v439 = vsel %vm218, %v438, 0
    %441 = vmatprep.subr.mxu0 0.0
    %442 = vmatpush1.msra.mxu0 %v214
    %443 = vmatprep.subr.mxu0 0.0
    %444 = vmatpush1.msra.mxu0 %v215
    %445 = vmatprep.subr.mxu0 0.0
    %446 = vmatpush1.msra.mxu0 %v216
    %447 = vmatprep.subr.mxu0 0.0
    %448 = vmatpush1.msra.mxu0 %v217
    %449 = vmatprep.subr.mxu0 0.0
    %450 = vmatpush1.msra.mxu0 0.0
    %451 = vmatprep.subr.mxu0 0.0
    %452 = vmatpush1.msra.mxu0 0.0
    %453 = vmatprep.subr.mxu0 0.0
    %454 = vmatpush1.msra.mxu0 0.0
    %455 = vmatprep.subr.mxu0 0.0
    %456 = vmatpush1.msra.mxu0 0.0
    %457 = vmatprep.subr.mxu0 0.0
    %458 = vmatpush1.msra.mxu0 0.0
    %459 = vmatprep.subr.mxu0 0.0
    %460 = vmatpush1.msra.mxu0 0.0
    %461 = vmatprep.subr.mxu0 0.0
    %462 = vmatpush1.msra.mxu0 0.0
    %463 = vmatprep.subr.mxu0 0.0
    %464 = vmatpush1.msra.mxu0 0.0
    %465 = vmatprep.subr.mxu0 0.0
    %466 = vmatpush1.msra.mxu0 0.0
    %467 = vmatprep.subr.mxu0 0.0
    %468 = vmatpush1.msra.mxu0 0.0
    %469 = vmatprep.subr.mxu0 0.0
    %470 = vmatpush1.msra.mxu0 0.0
    %471 = vmatprep.subr.mxu0 0.0
    %472 = vmatpush1.msra.mxu0 0.0
    %473 = vmatprep.subr.mxu0 0.0
    %474 = vmatpush1.msra.mxu0 0.0
    %475 = vmatprep.subr.mxu0 0.0
    %476 = vmatpush1.msra.mxu0 0.0
    %477 = vmatprep.subr.mxu0 0.0
    %478 = vmatpush1.msra.mxu0 0.0
    %479 = vmatprep.subr.mxu0 0.0
    %480 = vmatpush1.msra.mxu0 0.0
    %481 = vmatprep.subr.mxu0 0.0
    %482 = vmatpush1.msra.mxu0 0.0
    %483 = vmatprep.subr.mxu0 0.0
    %484 = vmatpush1.msra.mxu0 0.0
    %485 = vmatprep.subr.mxu0 0.0
    %486 = vmatpush1.msra.mxu0 0.0
    %487 = vmatprep.subr.mxu0 0.0
    %488 = vmatpush1.msra.mxu0 0.0
    %489 = vmatprep.subr.mxu0 0.0
    %490 = vmatpush1.msra.mxu0 0.0
    %491 = vmatprep.subr.mxu0 0.0
    %492 = vmatpush1.msra.mxu0 0.0
    %493 = vmatprep.subr.mxu0 0.0
    %494 = vmatpush1.msra.mxu0 0.0
    %495 = vmatprep.subr.mxu0 0.0
    %496 = vmatpush1.msra.mxu0 0.0
    %497 = vmatprep.subr.mxu0 0.0
    %498 = vmatpush1.msra.mxu0 0.0
    %499 = vmatprep.subr.mxu0 0.0
    %500 = vmatpush1.msra.mxu0 0.0
    %501 = vmatprep.subr.mxu0 0.0
    %502 = vmatpush1.msra.mxu0 0.0
    %503 = vmatprep.subr.mxu0 0.0
    %504 = vmatpush1.msra.mxu0 0.0
    %505 = vmatprep.mubr.f32.mxu0 0.0
    %506 = vmatmul.mubr.f32.gmra.mrb[0].mxu0 %v439
    %v507 = vpop.f32.mrb[0].mxu0
    %v508 = vadd.f32 0.0, %v507
    %v509 = vpop.f32.mrb[0].mxu0
    %510 = vdwg.mxu0
    %v512 = vrot.slane %v508, 6
    %v514 = vadd.f32 %v211, %v512
    %v515 = vxor.u32 %v514, 2147483648
    %v516 = vmul.f32 %v515, 1.442695
    %v517 = vpow.pop %v516
    %v518 = vadd.f32 %v517, 1.0
    %v519 = vrcp.pop %v518
    %v520 = vmul.f32 1.0, %v519
    %v521 = vtanh.pop %v514
    %v523 = vrot.slane %v422, 7
    %v525 = vmul.f32 %v520, %v523
    %527 = vrot.lane.b32.xlu0 %v521, 32
    %v528 = vpop.permute.xlu0 %527
    %v530 = vmul.f32 %v520, %v528
    %532 = vrot.lane.b32.xlu0 %v530, 32
    %v533 = vpop.permute.xlu0 %532
    %v535 = vadd.f32 %v525, %v533
    %v536 = vtanh.pop %v535
    %538 = vrot.lane.b32.xlu0 %v536, 32
    %v539 = vpop.permute.xlu0 %538
    %v541 = vmul.f32 %v520, %v539
    %vm542 = vcmp.eq.s32.totalorder %v129, 2
    %v543 = vlaneseq
    %v544 = vshrl.u32 %v543, 7
    %v545 = vsub.s32 2, %v544
    %v546 = vrot.slane %v541, %v545
    %v547 = vsel %vm542, %v546, %v434
    %v549 = vrot.slane %v541, 2
    %550 = vrot.lane.b32.xlu0 %v549, 64
    %v551 = vpop.permute.xlu0 %550
    %v552 = vsel %vm218, %v551, 0
    %554 = vmatprep.subr.mxu0 0.0
    %555 = vmatpush1.msra.mxu0 %v214
    %556 = vmatprep.subr.mxu0 0.0
    %557 = vmatpush1.msra.mxu0 %v215
    %558 = vmatprep.subr.mxu0 0.0
    %559 = vmatpush1.msra.mxu0 %v216
    %560 = vmatprep.subr.mxu0 0.0
    %561 = vmatpush1.msra.mxu0 %v217
    %562 = vmatprep.subr.mxu0 0.0
    %563 = vmatpush1.msra.mxu0 0.0
    %564 = vmatprep.subr.mxu0 0.0
    %565 = vmatpush1.msra.mxu0 0.0
    %566 = vmatprep.subr.mxu0 0.0
    %567 = vmatpush1.msra.mxu0 0.0
    %568 = vmatprep.subr.mxu0 0.0
    %569 = vmatpush1.msra.mxu0 0.0
    %570 = vmatprep.subr.mxu0 0.0
    %571 = vmatpush1.msra.mxu0 0.0
    %572 = vmatprep.subr.mxu0 0.0
    %573 = vmatpush1.msra.mxu0 0.0
    %574 = vmatprep.subr.mxu0 0.0
    %575 = vmatpush1.msra.mxu0 0.0
    %576 = vmatprep.subr.mxu0 0.0
    %577 = vmatpush1.msra.mxu0 0.0
    %578 = vmatprep.subr.mxu0 0.0
    %579 = vmatpush1.msra.mxu0 0.0
    %580 = vmatprep.subr.mxu0 0.0
    %581 = vmatpush1.msra.mxu0 0.0
    %582 = vmatprep.subr.mxu0 0.0
    %583 = vmatpush1.msra.mxu0 0.0
    %584 = vmatprep.subr.mxu0 0.0
    %585 = vmatpush1.msra.mxu0 0.0
    %586 = vmatprep.subr.mxu0 0.0
    %587 = vmatpush1.msra.mxu0 0.0
    %588 = vmatprep.subr.mxu0 0.0
    %589 = vmatpush1.msra.mxu0 0.0
    %590 = vmatprep.subr.mxu0 0.0
    %591 = vmatpush1.msra.mxu0 0.0
    %592 = vmatprep.subr.mxu0 0.0
    %593 = vmatpush1.msra.mxu0 0.0
    %594 = vmatprep.subr.mxu0 0.0
    %595 = vmatpush1.msra.mxu0 0.0
    %596 = vmatprep.subr.mxu0 0.0
    %597 = vmatpush1.msra.mxu0 0.0
    %598 = vmatprep.subr.mxu0 0.0
    %599 = vmatpush1.msra.mxu0 0.0
    %600 = vmatprep.subr.mxu0 0.0
    %601 = vmatpush1.msra.mxu0 0.0
    %602 = vmatprep.subr.mxu0 0.0
    %603 = vmatpush1.msra.mxu0 0.0
    %604 = vmatprep.subr.mxu0 0.0
    %605 = vmatpush1.msra.mxu0 0.0
    %606 = vmatprep.subr.mxu0 0.0
    %607 = vmatpush1.msra.mxu0 0.0
    %608 = vmatprep.subr.mxu0 0.0
    %609 = vmatpush1.msra.mxu0 0.0
    %610 = vmatprep.subr.mxu0 0.0
    %611 = vmatpush1.msra.mxu0 0.0
    %612 = vmatprep.subr.mxu0 0.0
    %613 = vmatpush1.msra.mxu0 0.0
    %614 = vmatprep.subr.mxu0 0.0
    %615 = vmatpush1.msra.mxu0 0.0
    %616 = vmatprep.subr.mxu0 0.0
    %617 = vmatpush1.msra.mxu0 0.0
    %618 = vmatprep.mubr.f32.mxu0 0.0
    %619 = vmatmul.mubr.f32.gmra.mrb[0].mxu0 %v552
    %v620 = vpop.f32.mrb[0].mxu0
    %v621 = vadd.f32 0.0, %v620
    %v622 = vpop.f32.mrb[0].mxu0
    %623 = vdwg.mxu0
    %v625 = vrot.slane %v621, 5
    %v627 = vadd.f32 %v211, %v625
    %v628 = vxor.u32 %v627, 2147483648
    %v629 = vmul.f32 %v628, 1.442695
    %v630 = vpow.pop %v629
    %v631 = vadd.f32 %v630, 1.0
    %v632 = vrcp.pop %v631
    %v633 = vmul.f32 1.0, %v632
    %v634 = vtanh.pop %v627
    %v636 = vrot.slane %v535, 7
    %v638 = vmul.f32 %v633, %v636
    %640 = vrot.lane.b32.xlu0 %v634, 32
    %v641 = vpop.permute.xlu0 %640
    %v643 = vmul.f32 %v633, %v641
    %645 = vrot.lane.b32.xlu0 %v643, 32
    %v646 = vpop.permute.xlu0 %645
    %v648 = vadd.f32 %v638, %v646
    %v649 = vtanh.pop %v648
    %651 = vrot.lane.b32.xlu0 %v649, 32
    %v652 = vpop.permute.xlu0 %651
    %v654 = vmul.f32 %v633, %v652
    %vm655 = vcmp.eq.s32.totalorder %v129, 3
    %v656 = vlaneseq
    %v657 = vshrl.u32 %v656, 7
    %v658 = vsub.s32 3, %v657
    %v659 = vrot.slane %v654, %v658
    %v660 = vsel %vm655, %v659, %v547
    %v662 = vrot.slane %v654, 3
    %663 = vrot.lane.b32.xlu0 %v662, 64
    %v664 = vpop.permute.xlu0 %663
    %v665 = vsel %vm218, %v664, 0
    %667 = vmatprep.subr.mxu0 0.0
    %668 = vmatpush1.msra.mxu0 %v214
    %669 = vmatprep.subr.mxu0 0.0
    %670 = vmatpush1.msra.mxu0 %v215
    %671 = vmatprep.subr.mxu0 0.0
    %672 = vmatpush1.msra.mxu0 %v216
    %673 = vmatprep.subr.mxu0 0.0
    %674 = vmatpush1.msra.mxu0 %v217
    %675 = vmatprep.subr.mxu0 0.0
    %676 = vmatpush1.msra.mxu0 0.0
    %677 = vmatprep.subr.mxu0 0.0
    %678 = vmatpush1.msra.mxu0 0.0
    %679 = vmatprep.subr.mxu0 0.0
    %680 = vmatpush1.msra.mxu0 0.0
    %681 = vmatprep.subr.mxu0 0.0
    %682 = vmatpush1.msra.mxu0 0.0
    %683 = vmatprep.subr.mxu0 0.0
    %684 = vmatpush1.msra.mxu0 0.0
    %685 = vmatprep.subr.mxu0 0.0
    %686 = vmatpush1.msra.mxu0 0.0
    %687 = vmatprep.subr.mxu0 0.0
    %688 = vmatpush1.msra.mxu0 0.0
    %689 = vmatprep.subr.mxu0 0.0
    %690 = vmatpush1.msra.mxu0 0.0
    %691 = vmatprep.subr.mxu0 0.0
    %692 = vmatpush1.msra.mxu0 0.0
    %693 = vmatprep.subr.mxu0 0.0
    %694 = vmatpush1.msra.mxu0 0.0
    %695 = vmatprep.subr.mxu0 0.0
    %696 = vmatpush1.msra.mxu0 0.0
    %697 = vmatprep.subr.mxu0 0.0
    %698 = vmatpush1.msra.mxu0 0.0
    %699 = vmatprep.subr.mxu0 0.0
    %700 = vmatpush1.msra.mxu0 0.0
    %701 = vmatprep.subr.mxu0 0.0
    %702 = vmatpush1.msra.mxu0 0.0
    %703 = vmatprep.subr.mxu0 0.0
    %704 = vmatpush1.msra.mxu0 0.0
    %705 = vmatprep.subr.mxu0 0.0
    %706 = vmatpush1.msra.mxu0 0.0
    %707 = vmatprep.subr.mxu0 0.0
    %708 = vmatpush1.msra.mxu0 0.0
    %709 = vmatprep.subr.mxu0 0.0
    %710 = vmatpush1.msra.mxu0 0.0
    %711 = vmatprep.subr.mxu0 0.0
    %712 = vmatpush1.msra.mxu0 0.0
    %713 = vmatprep.subr.mxu0 0.0
    %714 = vmatpush1.msra.mxu0 0.0
    %715 = vmatprep.subr.mxu0 0.0
    %716 = vmatpush1.msra.mxu0 0.0
    %717 = vmatprep.subr.mxu0 0.0
    %718 = vmatpush1.msra.mxu0 0.0
    %719 = vmatprep.subr.mxu0 0.0
    %720 = vmatpush1.msra.mxu0 0.0
    %721 = vmatprep.subr.mxu0 0.0
    %722 = vmatpush1.msra.mxu0 0.0
    %723 = vmatprep.subr.mxu0 0.0
    %724 = vmatpush1.msra.mxu0 0.0
    %725 = vmatprep.subr.mxu0 0.0
    %726 = vmatpush1.msra.mxu0 0.0
    %727 = vmatprep.subr.mxu0 0.0
    %728 = vmatpush1.msra.mxu0 0.0
    %729 = vmatprep.subr.mxu0 0.0
    %730 = vmatpush1.msra.mxu0 0.0
    %731 = vmatprep.mubr.f32.mxu0 0.0
    %732 = vmatmul.mubr.f32.gmra.mrb[0].mxu0 %v665
    %v733 = vpop.f32.mrb[0].mxu0
    %v734 = vadd.f32 0.0, %v733
    %v735 = vpop.f32.mrb[0].mxu0
    %736 = vdwg.mxu0
    %v738 = vrot.slane %v734, 4
    %v740 = vadd.f32 %v211, %v738
    %v741 = vxor.u32 %v740, 2147483648
    %v742 = vmul.f32 %v741, 1.442695
    %v743 = vpow.pop %v742
    %v744 = vadd.f32 %v743, 1.0
    %v745 = vrcp.pop %v744
    %v746 = vmul.f32 1.0, %v745
    %v747 = vtanh.pop %v740
    %v749 = vrot.slane %v648, 7
    %v751 = vmul.f32 %v746, %v749
    %753 = vrot.lane.b32.xlu0 %v747, 32
    %v754 = vpop.permute.xlu0 %753
    %v756 = vmul.f32 %v746, %v754
    %758 = vrot.lane.b32.xlu0 %v756, 32
    %v759 = vpop.permute.xlu0 %758
    %v761 = vadd.f32 %v751, %v759
    %v762 = vtanh.pop %v761
    %764 = vrot.lane.b32.xlu0 %v762, 32
    %v765 = vpop.permute.xlu0 %764
    %v767 = vmul.f32 %v746, %v765
    %vm768 = vcmp.eq.s32.totalorder %v129, 4
    %v769 = vlaneseq
    %v770 = vshrl.u32 %v769, 7
    %v771 = vsub.s32 4, %v770
    %v772 = vrot.slane %v767, %v771
    %v773 = vsel %vm768, %v772, %v660
    %v775 = vrot.slane %v767, 4
    %776 = vrot.lane.b32.xlu0 %v775, 64
    %v777 = vpop.permute.xlu0 %776
    %v778 = vsel %vm218, %v777, 0
    %780 = vmatprep.subr.mxu0 0.0
    %781 = vmatpush1.msra.mxu0 %v214
    %782 = vmatprep.subr.mxu0 0.0
    %783 = vmatpush1.msra.mxu0 %v215
    %784 = vmatprep.subr.mxu0 0.0
    %785 = vmatpush1.msra.mxu0 %v216
    %786 = vmatprep.subr.mxu0 0.0
    %787 = vmatpush1.msra.mxu0 %v217
    %788 = vmatprep.subr.mxu0 0.0
    %789 = vmatpush1.msra.mxu0 0.0
    %790 = vmatprep.subr.mxu0 0.0
    %791 = vmatpush1.msra.mxu0 0.0
    %792 = vmatprep.subr.mxu0 0.0
    %793 = vmatpush1.msra.mxu0 0.0
    %794 = vmatprep.subr.mxu0 0.0
    %795 = vmatpush1.msra.mxu0 0.0
    %796 = vmatprep.subr.mxu0 0.0
    %797 = vmatpush1.msra.mxu0 0.0
    %798 = vmatprep.subr.mxu0 0.0
    %799 = vmatpush1.msra.mxu0 0.0
    %800 = vmatprep.subr.mxu0 0.0
    %801 = vmatpush1.msra.mxu0 0.0
    %802 = vmatprep.subr.mxu0 0.0
    %803 = vmatpush1.msra.mxu0 0.0
    %804 = vmatprep.subr.mxu0 0.0
    %805 = vmatpush1.msra.mxu0 0.0
    %806 = vmatprep.subr.mxu0 0.0
    %807 = vmatpush1.msra.mxu0 0.0
    %808 = vmatprep.subr.mxu0 0.0
    %809 = vmatpush1.msra.mxu0 0.0
    %810 = vmatprep.subr.mxu0 0.0
    %811 = vmatpush1.msra.mxu0 0.0
    %812 = vmatprep.subr.mxu0 0.0
    %813 = vmatpush1.msra.mxu0 0.0
    %814 = vmatprep.subr.mxu0 0.0
    %815 = vmatpush1.msra.mxu0 0.0
    %816 = vmatprep.subr.mxu0 0.0
    %817 = vmatpush1.msra.mxu0 0.0
    %818 = vmatprep.subr.mxu0 0.0
    %819 = vmatpush1.msra.mxu0 0.0
    %820 = vmatprep.subr.mxu0 0.0
    %821 = vmatpush1.msra.mxu0 0.0
    %822 = vmatprep.subr.mxu0 0.0
    %823 = vmatpush1.msra.mxu0 0.0
    %824 = vmatprep.subr.mxu0 0.0
    %825 = vmatpush1.msra.mxu0 0.0
    %826 = vmatprep.subr.mxu0 0.0
    %827 = vmatpush1.msra.mxu0 0.0
    %828 = vmatprep.subr.mxu0 0.0
    %829 = vmatpush1.msra.mxu0 0.0
    %830 = vmatprep.subr.mxu0 0.0
    %831 = vmatpush1.msra.mxu0 0.0
    %832 = vmatprep.subr.mxu0 0.0
    %833 = vmatpush1.msra.mxu0 0.0
    %834 = vmatprep.subr.mxu0 0.0
    %835 = vmatpush1.msra.mxu0 0.0
    %836 = vmatprep.subr.mxu0 0.0
    %837 = vmatpush1.msra.mxu0 0.0
    %838 = vmatprep.subr.mxu0 0.0
    %839 = vmatpush1.msra.mxu0 0.0
    %840 = vmatprep.subr.mxu0 0.0
    %841 = vmatpush1.msra.mxu0 0.0
    %842 = vmatprep.subr.mxu0 0.0
    %843 = vmatpush1.msra.mxu0 0.0
    %844 = vmatprep.mubr.f32.mxu0 0.0
    %845 = vmatmul.mubr.f32.gmra.mrb[0].mxu0 %v778
    %v846 = vpop.f32.mrb[0].mxu0
    %v847 = vadd.f32 0.0, %v846
    %v848 = vpop.f32.mrb[0].mxu0
    %849 = vdwg.mxu0
    %v851 = vrot.slane %v847, 3
    %v853 = vadd.f32 %v211, %v851
    %v854 = vxor.u32 %v853, 2147483648
    %v855 = vmul.f32 %v854, 1.442695
    %v856 = vpow.pop %v855
    %v857 = vadd.f32 %v856, 1.0
    %v858 = vrcp.pop %v857
    %v859 = vmul.f32 1.0, %v858
    %v860 = vtanh.pop %v853
    %v862 = vrot.slane %v761, 7
    %v864 = vmul.f32 %v859, %v862
    %866 = vrot.lane.b32.xlu0 %v860, 32
    %v867 = vpop.permute.xlu0 %866
    %v869 = vmul.f32 %v859, %v867
    %871 = vrot.lane.b32.xlu0 %v869, 32
    %v872 = vpop.permute.xlu0 %871
    %v874 = vadd.f32 %v864, %v872
    %v875 = vtanh.pop %v874
    %877 = vrot.lane.b32.xlu0 %v875, 32
    %v878 = vpop.permute.xlu0 %877
    %v880 = vmul.f32 %v859, %v878
    %vm881 = vcmp.eq.s32.totalorder %v129, 5
    %v882 = vlaneseq
    %v883 = vshrl.u32 %v882, 7
    %v884 = vsub.s32 5, %v883
    %v885 = vrot.slane %v880, %v884
    %v886 = vsel %vm881, %v885, %v773
    %v888 = vrot.slane %v880, 5
    %889 = vrot.lane.b32.xlu0 %v888, 64
    %v890 = vpop.permute.xlu0 %889
    %v891 = vsel %vm218, %v890, 0
    %893 = vmatprep.subr.mxu0 0.0
    %894 = vmatpush1.msra.mxu0 %v214
    %895 = vmatprep.subr.mxu0 0.0
    %896 = vmatpush1.msra.mxu0 %v215
    %897 = vmatprep.subr.mxu0 0.0
    %898 = vmatpush1.msra.mxu0 %v216
    %899 = vmatprep.subr.mxu0 0.0
    %900 = vmatpush1.msra.mxu0 %v217
    %901 = vmatprep.subr.mxu0 0.0
    %902 = vmatpush1.msra.mxu0 0.0
    %903 = vmatprep.subr.mxu0 0.0
    %904 = vmatpush1.msra.mxu0 0.0
    %905 = vmatprep.subr.mxu0 0.0
    %906 = vmatpush1.msra.mxu0 0.0
    %907 = vmatprep.subr.mxu0 0.0
    %908 = vmatpush1.msra.mxu0 0.0
    %909 = vmatprep.subr.mxu0 0.0
    %910 = vmatpush1.msra.mxu0 0.0
    %911 = vmatprep.subr.mxu0 0.0
    %912 = vmatpush1.msra.mxu0 0.0
    %913 = vmatprep.subr.mxu0 0.0
    %914 = vmatpush1.msra.mxu0 0.0
    %915 = vmatprep.subr.mxu0 0.0
    %916 = vmatpush1.msra.mxu0 0.0
    %917 = vmatprep.subr.mxu0 0.0
    %918 = vmatpush1.msra.mxu0 0.0
    %919 = vmatprep.subr.mxu0 0.0
    %920 = vmatpush1.msra.mxu0 0.0
    %921 = vmatprep.subr.mxu0 0.0
    %922 = vmatpush1.msra.mxu0 0.0
    %923 = vmatprep.subr.mxu0 0.0
    %924 = vmatpush1.msra.mxu0 0.0
    %925 = vmatprep.subr.mxu0 0.0
    %926 = vmatpush1.msra.mxu0 0.0
    %927 = vmatprep.subr.mxu0 0.0
    %928 = vmatpush1.msra.mxu0 0.0
    %929 = vmatprep.subr.mxu0 0.0
    %930 = vmatpush1.msra.mxu0 0.0
    %931 = vmatprep.subr.mxu0 0.0
    %932 = vmatpush1.msra.mxu0 0.0
    %933 = vmatprep.subr.mxu0 0.0
    %934 = vmatpush1.msra.mxu0 0.0
    %935 = vmatprep.subr.mxu0 0.0
    %936 = vmatpush1.msra.mxu0 0.0
    %937 = vmatprep.subr.mxu0 0.0
    %938 = vmatpush1.msra.mxu0 0.0
    %939 = vmatprep.subr.mxu0 0.0
    %940 = vmatpush1.msra.mxu0 0.0
    %941 = vmatprep.subr.mxu0 0.0
    %942 = vmatpush1.msra.mxu0 0.0
    %943 = vmatprep.subr.mxu0 0.0
    %944 = vmatpush1.msra.mxu0 0.0
    %945 = vmatprep.subr.mxu0 0.0
    %946 = vmatpush1.msra.mxu0 0.0
    %947 = vmatprep.subr.mxu0 0.0
    %948 = vmatpush1.msra.mxu0 0.0
    %949 = vmatprep.subr.mxu0 0.0
    %950 = vmatpush1.msra.mxu0 0.0
    %951 = vmatprep.subr.mxu0 0.0
    %952 = vmatpush1.msra.mxu0 0.0
    %953 = vmatprep.subr.mxu0 0.0
    %954 = vmatpush1.msra.mxu0 0.0
    %955 = vmatprep.subr.mxu0 0.0
    %956 = vmatpush1.msra.mxu0 0.0
    %957 = vmatprep.mubr.f32.mxu0 0.0
    %958 = vmatmul.mubr.f32.gmra.mrb[0].mxu0 %v891
    %v959 = vpop.f32.mrb[0].mxu0
    %v960 = vadd.f32 0.0, %v959
    %v961 = vpop.f32.mrb[0].mxu0
    %962 = vdwg.mxu0
    %v964 = vrot.slane %v960, 2
    %v966 = vadd.f32 %v211, %v964
    %v967 = vxor.u32 %v966, 2147483648
    %v968 = vmul.f32 %v967, 1.442695
    %v969 = vpow.pop %v968
    %v970 = vadd.f32 %v969, 1.0
    %v971 = vrcp.pop %v970
    %v972 = vmul.f32 1.0, %v971
    %v973 = vtanh.pop %v966
    %v975 = vrot.slane %v874, 7
    %v977 = vmul.f32 %v972, %v975
    %979 = vrot.lane.b32.xlu0 %v973, 32
    %v980 = vpop.permute.xlu0 %979
    %v982 = vmul.f32 %v972, %v980
    %984 = vrot.lane.b32.xlu0 %v982, 32
    %v985 = vpop.permute.xlu0 %984
    %v987 = vadd.f32 %v977, %v985
    %v988 = vtanh.pop %v987
    %990 = vrot.lane.b32.xlu0 %v988, 32
    %v991 = vpop.permute.xlu0 %990
    %v993 = vmul.f32 %v972, %v991
    %vm994 = vcmp.eq.s32.totalorder %v129, 6
    %v995 = vlaneseq
    %v996 = vshrl.u32 %v995, 7
    %v997 = vsub.s32 6, %v996
    %v998 = vrot.slane %v993, %v997
    %v999 = vsel %vm994, %v998, %v886
    %v1001 = vrot.slane %v993, 6
    %1002 = vrot.lane.b32.xlu0 %v1001, 64
    %v1003 = vpop.permute.xlu0 %1002
    %v1004 = vsel %vm218, %v1003, 0
    %1006 = vmatprep.subr.mxu0 0.0
    %1007 = vmatpush1.msra.mxu0 %v214
    %1008 = vmatprep.subr.mxu0 0.0
    %1009 = vmatpush1.msra.mxu0 %v215
    %1010 = vmatprep.subr.mxu0 0.0
    %1011 = vmatpush1.msra.mxu0 %v216
    %1012 = vmatprep.subr.mxu0 0.0
    %1013 = vmatpush1.msra.mxu0 %v217
    %1014 = vmatprep.subr.mxu0 0.0
    %1015 = vmatpush1.msra.mxu0 0.0
    %1016 = vmatprep.subr.mxu0 0.0
    %1017 = vmatpush1.msra.mxu0 0.0
    %1018 = vmatprep.subr.mxu0 0.0
    %1019 = vmatpush1.msra.mxu0 0.0
    %1020 = vmatprep.subr.mxu0 0.0
    %1021 = vmatpush1.msra.mxu0 0.0
    %1022 = vmatprep.subr.mxu0 0.0
    %1023 = vmatpush1.msra.mxu0 0.0
    %1024 = vmatprep.subr.mxu0 0.0
    %1025 = vmatpush1.msra.mxu0 0.0
    %1026 = vmatprep.subr.mxu0 0.0
    %1027 = vmatpush1.msra.mxu0 0.0
    %1028 = vmatprep.subr.mxu0 0.0
    %1029 = vmatpush1.msra.mxu0 0.0
    %1030 = vmatprep.subr.mxu0 0.0
    %1031 = vmatpush1.msra.mxu0 0.0
    %1032 = vmatprep.subr.mxu0 0.0
    %1033 = vmatpush1.msra.mxu0 0.0
    %1034 = vmatprep.subr.mxu0 0.0
    %1035 = vmatpush1.msra.mxu0 0.0
    %1036 = vmatprep.subr.mxu0 0.0
    %1037 = vmatpush1.msra.mxu0 0.0
    %1038 = vmatprep.subr.mxu0 0.0
    %1039 = vmatpush1.msra.mxu0 0.0
    %1040 = vmatprep.subr.mxu0 0.0
    %1041 = vmatpush1.msra.mxu0 0.0
    %1042 = vmatprep.subr.mxu0 0.0
    %1043 = vmatpush1.msra.mxu0 0.0
    %1044 = vmatprep.subr.mxu0 0.0
    %1045 = vmatpush1.msra.mxu0 0.0
    %1046 = vmatprep.subr.mxu0 0.0
    %1047 = vmatpush1.msra.mxu0 0.0
    %1048 = vmatprep.subr.mxu0 0.0
    %1049 = vmatpush1.msra.mxu0 0.0
    %1050 = vmatprep.subr.mxu0 0.0
    %1051 = vmatpush1.msra.mxu0 0.0
    %1052 = vmatprep.subr.mxu0 0.0
    %1053 = vmatpush1.msra.mxu0 0.0
    %1054 = vmatprep.subr.mxu0 0.0
    %1055 = vmatpush1.msra.mxu0 0.0
    %1056 = vmatprep.subr.mxu0 0.0
    %1057 = vmatpush1.msra.mxu0 0.0
    %1058 = vmatprep.subr.mxu0 0.0
    %1059 = vmatpush1.msra.mxu0 0.0
    %1060 = vmatprep.subr.mxu0 0.0
    %1061 = vmatpush1.msra.mxu0 0.0
    %1062 = vmatprep.subr.mxu0 0.0
    %1063 = vmatpush1.msra.mxu0 0.0
    %1064 = vmatprep.subr.mxu0 0.0
    %1065 = vmatpush1.msra.mxu0 0.0
    %1066 = vmatprep.subr.mxu0 0.0
    %1067 = vmatpush1.msra.mxu0 0.0
    %1068 = vmatprep.subr.mxu0 0.0
    %1069 = vmatpush1.msra.mxu0 0.0
    %1070 = vmatprep.mubr.f32.mxu0 0.0
    %1071 = vmatmul.mubr.f32.gmra.mrb[0].mxu0 %v1004
    %v1072 = vpop.f32.mrb[0].mxu0
    %v1073 = vadd.f32 0.0, %v1072
    %v1074 = vpop.f32.mrb[0].mxu0
    %1075 = vdwg.mxu0
    %v1077 = vrot.slane %v1073, 1
    %v1079 = vadd.f32 %v211, %v1077
    %v1080 = vxor.u32 %v1079, 2147483648
    %v1081 = vmul.f32 %v1080, 1.442695
    %v1082 = vpow.pop %v1081
    %v1083 = vadd.f32 %v1082, 1.0
    %v1084 = vrcp.pop %v1083
    %v1085 = vmul.f32 1.0, %v1084
    %v1086 = vtanh.pop %v1079
    %v1088 = vrot.slane %v987, 7
    %v1090 = vmul.f32 %v1085, %v1088
    %1092 = vrot.lane.b32.xlu0 %v1086, 32
    %v1093 = vpop.permute.xlu0 %1092
    %v1095 = vmul.f32 %v1085, %v1093
    %1097 = vrot.lane.b32.xlu0 %v1095, 32
    %v1098 = vpop.permute.xlu0 %1097
    %v1100 = vadd.f32 %v1090, %v1098
    %v1101 = vtanh.pop %v1100
    %1103 = vrot.lane.b32.xlu0 %v1101, 32
    %v1104 = vpop.permute.xlu0 %1103
    %v1106 = vmul.f32 %v1085, %v1104
    %vm1107 = vcmp.eq.s32.totalorder %v129, 7
    %v1108 = vlaneseq
    %v1109 = vshrl.u32 %v1108, 7
    %v1110 = vsub.s32 7, %v1109
    %v1111 = vrot.slane %v1106, %v1110
    %v1112 = vsel %vm1107, %v1111, %v999
    %v1113 = vld [vmem:[#allocation8] sm:$0xff]
    %v1114 = vld [vmem:[#allocation8 + $0x8] sm:$0xff]
    %v1115 = vld [vmem:[#allocation8 + $0x10] sm:$0xff]
    %v1116 = vld [vmem:[#allocation8 + $0x18] sm:$0xff]
    %v1117 = vld [vmem:[%s6] sm:$0x1]
    %v1119 = vlaneseq
    %v1120 = vshrl.u32 %v1119, 7
    %v1121 = vsub.s32 0, %v1120
    %v1122 = vrot.slane %v1117, %v1121
    %1125 = vrot.lane.b32.xlu0 %v1112, 64
    %v1126 = vpop.permute.xlu0 %1125
    %v1127 = vsel %vm218, %v1126, 0
    %1129 = vmatprep.subr.mxu0 0.0
    %1130 = vmatpush1.msra.mxu0 %v1113
    %1131 = vmatprep.subr.mxu0 0.0
    %1132 = vmatpush1.msra.mxu0 %v1114
    %1133 = vmatprep.subr.mxu0 0.0
    %1134 = vmatpush1.msra.mxu0 %v1115
    %1135 = vmatprep.subr.mxu0 0.0
    %1136 = vmatpush1.msra.mxu0 %v1116
    %1137 = vmatprep.subr.mxu0 0.0
    %1138 = vmatpush1.msra.mxu0 0.0
    %1139 = vmatprep.subr.mxu0 0.0
    %1140 = vmatpush1.msra.mxu0 0.0
    %1141 = vmatprep.subr.mxu0 0.0
    %1142 = vmatpush1.msra.mxu0 0.0
    %1143 = vmatprep.subr.mxu0 0.0
    %1144 = vmatpush1.msra.mxu0 0.0
    %1145 = vmatprep.subr.mxu0 0.0
    %1146 = vmatpush1.msra.mxu0 0.0
    %1147 = vmatprep.subr.mxu0 0.0
    %1148 = vmatpush1.msra.mxu0 0.0
    %1149 = vmatprep.subr.mxu0 0.0
    %1150 = vmatpush1.msra.mxu0 0.0
    %1151 = vmatprep.subr.mxu0 0.0
    %1152 = vmatpush1.msra.mxu0 0.0
    %1153 = vmatprep.subr.mxu0 0.0
    %1154 = vmatpush1.msra.mxu0 0.0
    %1155 = vmatprep.subr.mxu0 0.0
    %1156 = vmatpush1.msra.mxu0 0.0
    %1157 = vmatprep.subr.mxu0 0.0
    %1158 = vmatpush1.msra.mxu0 0.0
    %1159 = vmatprep.subr.mxu0 0.0
    %1160 = vmatpush1.msra.mxu0 0.0
    %1161 = vmatprep.subr.mxu0 0.0
    %1162 = vmatpush1.msra.mxu0 0.0
    %1163 = vmatprep.subr.mxu0 0.0
    %1164 = vmatpush1.msra.mxu0 0.0
    %1165 = vmatprep.subr.mxu0 0.0
    %1166 = vmatpush1.msra.mxu0 0.0
    %1167 = vmatprep.subr.mxu0 0.0
    %1168 = vmatpush1.msra.mxu0 0.0
    %1169 = vmatprep.subr.mxu0 0.0
    %1170 = vmatpush1.msra.mxu0 0.0
    %1171 = vmatprep.subr.mxu0 0.0
    %1172 = vmatpush1.msra.mxu0 0.0
    %1173 = vmatprep.subr.mxu0 0.0
    %1174 = vmatpush1.msra.mxu0 0.0
    %1175 = vmatprep.subr.mxu0 0.0
    %1176 = vmatpush1.msra.mxu0 0.0
    %1177 = vmatprep.subr.mxu0 0.0
    %1178 = vmatpush1.msra.mxu0 0.0
    %1179 = vmatprep.subr.mxu0 0.0
    %1180 = vmatpush1.msra.mxu0 0.0
    %1181 = vmatprep.subr.mxu0 0.0
    %1182 = vmatpush1.msra.mxu0 0.0
    %1183 = vmatprep.subr.mxu0 0.0
    %1184 = vmatpush1.msra.mxu0 0.0
    %1185 = vmatprep.subr.mxu0 0.0
    %1186 = vmatpush1.msra.mxu0 0.0
    %1187 = vmatprep.subr.mxu0 0.0
    %1188 = vmatpush1.msra.mxu0 0.0
    %1189 = vmatprep.subr.mxu0 0.0
    %1190 = vmatpush1.msra.mxu0 0.0
    %1191 = vmatprep.subr.mxu0 0.0
    %1192 = vmatpush1.msra.mxu0 0.0
    %1193 = vmatprep.mubr.f32.mxu0 0.0
    %1194 = vmatmul.mubr.f32.gmra.mrb[0].mxu0 %v1127
    %v1195 = vpop.f32.mrb[0].mxu0
    %v1196 = vadd.f32 %v1122, %v1195
    %v1197 = vpop.f32.mrb[0].mxu0
    %1198 = vdwg.mxu0
    %v1199 = vld [vmem:[#allocation10] sm:$0xff]
    %v1200 = vld [vmem:[#allocation10 + $0x8] sm:$0xff]
    %v1201 = vld [vmem:[#allocation10 + $0x10] sm:$0xff]
    %v1202 = vld [vmem:[#allocation10 + $0x18] sm:$0xff]
    %1203 = vmatprep.subr.mxu0 0.0
    %1204 = vmatpush1.msra.mxu0 %v1199
    %1205 = vmatprep.subr.mxu0 0.0
    %1206 = vmatpush1.msra.mxu0 %v1200
    %1207 = vmatprep.subr.mxu0 0.0
    %1208 = vmatpush1.msra.mxu0 %v1201
    %1209 = vmatprep.subr.mxu0 0.0
    %1210 = vmatpush1.msra.mxu0 %v1202
    %1211 = vmatprep.subr.mxu0 0.0
    %1212 = vmatpush1.msra.mxu0 0.0
    %1213 = vmatprep.subr.mxu0 0.0
    %1214 = vmatpush1.msra.mxu0 0.0
    %1215 = vmatprep.subr.mxu0 0.0
    %1216 = vmatpush1.msra.mxu0 0.0
    %1217 = vmatprep.subr.mxu0 0.0
    %1218 = vmatpush1.msra.mxu0 0.0
    %1219 = vmatprep.subr.mxu0 0.0
    %1220 = vmatpush1.msra.mxu0 0.0
    %1221 = vmatprep.subr.mxu0 0.0
    %1222 = vmatpush1.msra.mxu0 0.0
    %1223 = vmatprep.subr.mxu0 0.0
    %1224 = vmatpush1.msra.mxu0 0.0
    %1225 = vmatprep.subr.mxu0 0.0
    %1226 = vmatpush1.msra.mxu0 0.0
    %1227 = vmatprep.subr.mxu0 0.0
    %1228 = vmatpush1.msra.mxu0 0.0
    %1229 = vmatprep.subr.mxu0 0.0
    %1230 = vmatpush1.msra.mxu0 0.0
    %1231 = vmatprep.subr.mxu0 0.0
    %1232 = vmatpush1.msra.mxu0 0.0
    %1233 = vmatprep.subr.mxu0 0.0
    %1234 = vmatpush1.msra.mxu0 0.0
    %1235 = vmatprep.subr.mxu0 0.0
    %1236 = vmatpush1.msra.mxu0 0.0
    %1237 = vmatprep.subr.mxu0 0.0
    %1238 = vmatpush1.msra.mxu0 0.0
    %1239 = vmatprep.subr.mxu0 0.0
    %1240 = vmatpush1.msra.mxu0 0.0
    %1241 = vmatprep.subr.mxu0 0.0
    %1242 = vmatpush1.msra.mxu0 0.0
    %1243 = vmatprep.subr.mxu0 0.0
    %1244 = vmatpush1.msra.mxu0 0.0
    %1245 = vmatprep.subr.mxu0 0.0
    %1246 = vmatpush1.msra.mxu0 0.0
    %1247 = vmatprep.subr.mxu0 0.0
    %1248 = vmatpush1.msra.mxu0 0.0
    %1249 = vmatprep.subr.mxu0 0.0
    %1250 = vmatpush1.msra.mxu0 0.0
    %1251 = vmatprep.subr.mxu0 0.0
    %1252 = vmatpush1.msra.mxu0 0.0
    %1253 = vmatprep.subr.mxu0 0.0
    %1254 = vmatpush1.msra.mxu0 0.0
    %1255 = vmatprep.subr.mxu0 0.0
    %1256 = vmatpush1.msra.mxu0 0.0
    %1257 = vmatprep.subr.mxu0 0.0
    %1258 = vmatpush1.msra.mxu0 0.0
    %1259 = vmatprep.subr.mxu0 0.0
    %1260 = vmatpush1.msra.mxu0 0.0
    %1261 = vmatprep.subr.mxu0 0.0
    %1262 = vmatpush1.msra.mxu0 0.0
    %1263 = vmatprep.subr.mxu0 0.0
    %1264 = vmatpush1.msra.mxu0 0.0
    %1265 = vmatprep.subr.mxu0 0.0
    %1266 = vmatpush1.msra.mxu0 0.0
    %1267 = vmatprep.mubr.f32.mxu0 0.0
    %1268 = vmatmul.mubr.f32.gmra.mrb[0].mxu0 %v220
    %v1269 = vpop.f32.mrb[0].mxu0
    %v1270 = vadd.f32 0.0, %v1269
    %v1271 = vpop.f32.mrb[0].mxu0
    %1272 = vdwg.mxu0
    %v1273 = vadd.f32 %v1196, %v1270
    %v1274 = vxor.u32 %v1273, 2147483648
    %v1275 = vmul.f32 %v1274, 1.442695
    %v1276 = vpow.pop %v1275
    %v1277 = vadd.f32 %v1276, 1.0
    %v1278 = vrcp.pop %v1277
    %v1279 = vmul.f32 1.0, %v1278
    %v1280 = vtanh.pop %v1273
    %v1281 = vmul.f32 %v1279, 0.0
    %1283 = vrot.lane.b32.xlu0 %v1280, 32
    %v1284 = vpop.permute.xlu0 %1283
    %v1286 = vmul.f32 %v1279, %v1284
    %1288 = vrot.lane.b32.xlu0 %v1286, 32
    %v1289 = vpop.permute.xlu0 %1288
    %v1291 = vadd.f32 %v1281, %v1289
    %v1292 = vtanh.pop %v1291
    %1294 = vrot.lane.b32.xlu0 %v1292, 32
    %v1295 = vpop.permute.xlu0 %1294
    %v1297 = vmul.f32 %v1279, %v1295
    %v1298 = vlaneseq
    %v1299 = vshrl.u32 %v1298, 7
    %v1300 = vsub.s32 0, %v1299
    %v1301 = vrot.slane %v1297, %v1300
    %v1302 = vsel %vm317, %v1301, 0.0
    %1304 = vrot.lane.b32.xlu0 %v1297, 64
    %v1305 = vpop.permute.xlu0 %1304
    %v1306 = vsel %vm218, %v1305, 0
    %1308 = vmatprep.subr.mxu0 0.0
    %1309 = vmatpush1.msra.mxu0 %v1199
    %1310 = vmatprep.subr.mxu0 0.0
    %1311 = vmatpush1.msra.mxu0 %v1200
    %1312 = vmatprep.subr.mxu0 0.0
    %1313 = vmatpush1.msra.mxu0 %v1201
    %1314 = vmatprep.subr.mxu0 0.0
    %1315 = vmatpush1.msra.mxu0 %v1202
    %1316 = vmatprep.subr.mxu0 0.0
    %1317 = vmatpush1.msra.mxu0 0.0
    %1318 = vmatprep.subr.mxu0 0.0
    %1319 = vmatpush1.msra.mxu0 0.0
    %1320 = vmatprep.subr.mxu0 0.0
    %1321 = vmatpush1.msra.mxu0 0.0
    %1322 = vmatprep.subr.mxu0 0.0
    %1323 = vmatpush1.msra.mxu0 0.0
    %1324 = vmatprep.subr.mxu0 0.0
    %1325 = vmatpush1.msra.mxu0 0.0
    %1326 = vmatprep.subr.mxu0 0.0
    %1327 = vmatpush1.msra.mxu0 0.0
    %1328 = vmatprep.subr.mxu0 0.0
    %1329 = vmatpush1.msra.mxu0 0.0
    %1330 = vmatprep.subr.mxu0 0.0
    %1331 = vmatpush1.msra.mxu0 0.0
    %1332 = vmatprep.subr.mxu0 0.0
    %1333 = vmatpush1.msra.mxu0 0.0
    %1334 = vmatprep.subr.mxu0 0.0
    %1335 = vmatpush1.msra.mxu0 0.0
    %1336 = vmatprep.subr.mxu0 0.0
    %1337 = vmatpush1.msra.mxu0 0.0
    %1338 = vmatprep.subr.mxu0 0.0
    %1339 = vmatpush1.msra.mxu0 0.0
    %1340 = vmatprep.subr.mxu0 0.0
    %1341 = vmatpush1.msra.mxu0 0.0
    %1342 = vmatprep.subr.mxu0 0.0
    %1343 = vmatpush1.msra.mxu0 0.0
    %1344 = vmatprep.subr.mxu0 0.0
    %1345 = vmatpush1.msra.mxu0 0.0
    %1346 = vmatprep.subr.mxu0 0.0
    %1347 = vmatpush1.msra.mxu0 0.0
    %1348 = vmatprep.subr.mxu0 0.0
    %1349 = vmatpush1.msra.mxu0 0.0
    %1350 = vmatprep.subr.mxu0 0.0
    %1351 = vmatpush1.msra.mxu0 0.0
    %1352 = vmatprep.subr.mxu0 0.0
    %1353 = vmatpush1.msra.mxu0 0.0
    %1354 = vmatprep.subr.mxu0 0.0
    %1355 = vmatpush1.msra.mxu0 0.0
    %1356 = vmatprep.subr.mxu0 0.0
    %1357 = vmatpush1.msra.mxu0 0.0
    %1358 = vmatprep.subr.mxu0 0.0
    %1359 = vmatpush1.msra.mxu0 0.0
    %1360 = vmatprep.subr.mxu0 0.0
    %1361 = vmatpush1.msra.mxu0 0.0
    %1362 = vmatprep.subr.mxu0 0.0
    %1363 = vmatpush1.msra.mxu0 0.0
    %1364 = vmatprep.subr.mxu0 0.0
    %1365 = vmatpush1.msra.mxu0 0.0
    %1366 = vmatprep.subr.mxu0 0.0
    %1367 = vmatpush1.msra.mxu0 0.0
    %1368 = vmatprep.subr.mxu0 0.0
    %1369 = vmatpush1.msra.mxu0 0.0
    %1370 = vmatprep.subr.mxu0 0.0
    %1371 = vmatpush1.msra.mxu0 0.0
    %1372 = vmatprep.mubr.f32.mxu0 0.0
    %1373 = vmatmul.mubr.f32.gmra.mrb[0].mxu0 %v1306
    %v1374 = vpop.f32.mrb[0].mxu0
    %v1375 = vadd.f32 0.0, %v1374
    %v1376 = vpop.f32.mrb[0].mxu0
    %1377 = vdwg.mxu0
    %v1379 = vrot.slane %v1375, 7
    %v1381 = vadd.f32 %v1196, %v1379
    %v1382 = vxor.u32 %v1381, 2147483648
    %v1383 = vmul.f32 %v1382, 1.442695
    %v1384 = vpow.pop %v1383
    %v1385 = vadd.f32 %v1384, 1.0
    %v1386 = vrcp.pop %v1385
    %v1387 = vmul.f32 1.0, %v1386
    %v1388 = vtanh.pop %v1381
    %v1390 = vrot.slane %v1291, 7
    %v1392 = vmul.f32 %v1387, %v1390
    %1394 = vrot.lane.b32.xlu0 %v1388, 32
    %v1395 = vpop.permute.xlu0 %1394
    %v1397 = vmul.f32 %v1387, %v1395
    %1399 = vrot.lane.b32.xlu0 %v1397, 32
    %v1400 = vpop.permute.xlu0 %1399
    %v1402 = vadd.f32 %v1392, %v1400
    %v1403 = vtanh.pop %v1402
    %1405 = vrot.lane.b32.xlu0 %v1403, 32
    %v1406 = vpop.permute.xlu0 %1405
    %v1408 = vmul.f32 %v1387, %v1406
    %v1409 = vlaneseq
    %v1410 = vshrl.u32 %v1409, 7
    %v1411 = vsub.s32 1, %v1410
    %v1412 = vrot.slane %v1408, %v1411
    %v1413 = vsel %vm429, %v1412, %v1302
    %v1415 = vrot.slane %v1408, 1
    %1416 = vrot.lane.b32.xlu0 %v1415, 64
    %v1417 = vpop.permute.xlu0 %1416
    %v1418 = vsel %vm218, %v1417, 0
    %1420 = vmatprep.subr.mxu0 0.0
    %1421 = vmatpush1.msra.mxu0 %v1199
    %1422 = vmatprep.subr.mxu0 0.0
    %1423 = vmatpush1.msra.mxu0 %v1200
    %1424 = vmatprep.subr.mxu0 0.0
    %1425 = vmatpush1.msra.mxu0 %v1201
    %1426 = vmatprep.subr.mxu0 0.0
    %1427 = vmatpush1.msra.mxu0 %v1202
    %1428 = vmatprep.subr.mxu0 0.0
    %1429 = vmatpush1.msra.mxu0 0.0
    %1430 = vmatprep.subr.mxu0 0.0
    %1431 = vmatpush1.msra.mxu0 0.0
    %1432 = vmatprep.subr.mxu0 0.0
    %1433 = vmatpush1.msra.mxu0 0.0
    %1434 = vmatprep.subr.mxu0 0.0
    %1435 = vmatpush1.msra.mxu0 0.0
    %1436 = vmatprep.subr.mxu0 0.0
    %1437 = vmatpush1.msra.mxu0 0.0
    %1438 = vmatprep.subr.mxu0 0.0
    %1439 = vmatpush1.msra.mxu0 0.0
    %1440 = vmatprep.subr.mxu0 0.0
    %1441 = vmatpush1.msra.mxu0 0.0
    %1442 = vmatprep.subr.mxu0 0.0
    %1443 = vmatpush1.msra.mxu0 0.0
    %1444 = vmatprep.subr.mxu0 0.0
    %1445 = vmatpush1.msra.mxu0 0.0
    %1446 = vmatprep.subr.mxu0 0.0
    %1447 = vmatpush1.msra.mxu0 0.0
    %1448 = vmatprep.subr.mxu0 0.0
    %1449 = vmatpush1.msra.mxu0 0.0
    %1450 = vmatprep.subr.mxu0 0.0
    %1451 = vmatpush1.msra.mxu0 0.0
    %1452 = vmatprep.subr.mxu0 0.0
    %1453 = vmatpush1.msra.mxu0 0.0
    %1454 = vmatprep.subr.mxu0 0.0
    %1455 = vmatpush1.msra.mxu0 0.0
    %1456 = vmatprep.subr.mxu0 0.0
    %1457 = vmatpush1.msra.mxu0 0.0
    %1458 = vmatprep.subr.mxu0 0.0
    %1459 = vmatpush1.msra.mxu0 0.0
    %1460 = vmatprep.subr.mxu0 0.0
    %1461 = vmatpush1.msra.mxu0 0.0
    %1462 = vmatprep.subr.mxu0 0.0
    %1463 = vmatpush1.msra.mxu0 0.0
    %1464 = vmatprep.subr.mxu0 0.0
    %1465 = vmatpush1.msra.mxu0 0.0
    %1466 = vmatprep.subr.mxu0 0.0
    %1467 = vmatpush1.msra.mxu0 0.0
    %1468 = vmatprep.subr.mxu0 0.0
    %1469 = vmatpush1.msra.mxu0 0.0
    %1470 = vmatprep.subr.mxu0 0.0
    %1471 = vmatpush1.msra.mxu0 0.0
    %1472 = vmatprep.subr.mxu0 0.0
    %1473 = vmatpush1.msra.mxu0 0.0
    %1474 = vmatprep.subr.mxu0 0.0
    %1475 = vmatpush1.msra.mxu0 0.0
    %1476 = vmatprep.subr.mxu0 0.0
    %1477 = vmatpush1.msra.mxu0 0.0
    %1478 = vmatprep.subr.mxu0 0.0
    %1479 = vmatpush1.msra.mxu0 0.0
    %1480 = vmatprep.subr.mxu0 0.0
    %1481 = vmatpush1.msra.mxu0 0.0
    %1482 = vmatprep.subr.mxu0 0.0
    %1483 = vmatpush1.msra.mxu0 0.0
    %1484 = vmatprep.mubr.f32.mxu0 0.0
    %1485 = vmatmul.mubr.f32.gmra.mrb[0].mxu0 %v1418
    %v1486 = vpop.f32.mrb[0].mxu0
    %v1487 = vadd.f32 0.0, %v1486
    %v1488 = vpop.f32.mrb[0].mxu0
    %1489 = vdwg.mxu0
    %v1491 = vrot.slane %v1487, 6
    %v1493 = vadd.f32 %v1196, %v1491
    %v1494 = vxor.u32 %v1493, 2147483648
    %v1495 = vmul.f32 %v1494, 1.442695
    %v1496 = vpow.pop %v1495
    %v1497 = vadd.f32 %v1496, 1.0
    %v1498 = vrcp.pop %v1497
    %v1499 = vmul.f32 1.0, %v1498
    %v1500 = vtanh.pop %v1493
    %v1502 = vrot.slane %v1402, 7
    %v1504 = vmul.f32 %v1499, %v1502
    %1506 = vrot.lane.b32.xlu0 %v1500, 32
    %v1507 = vpop.permute.xlu0 %1506
    %v1509 = vmul.f32 %v1499, %v1507
    %1511 = vrot.lane.b32.xlu0 %v1509, 32
    %v1512 = vpop.permute.xlu0 %1511
    %v1514 = vadd.f32 %v1504, %v1512
    %v1515 = vtanh.pop %v1514
    %1517 = vrot.lane.b32.xlu0 %v1515, 32
    %v1518 = vpop.permute.xlu0 %1517
    %v1520 = vmul.f32 %v1499, %v1518
    %v1521 = vlaneseq
    %v1522 = vshrl.u32 %v1521, 7
    %v1523 = vsub.s32 2, %v1522
    %v1524 = vrot.slane %v1520, %v1523
    %v1525 = vsel %vm542, %v1524, %v1413
    %v1527 = vrot.slane %v1520, 2
    %1528 = vrot.lane.b32.xlu0 %v1527, 64
    %v1529 = vpop.permute.xlu0 %1528
    %v1530 = vsel %vm218, %v1529, 0
    %1532 = vmatprep.subr.mxu0 0.0
    %1533 = vmatpush1.msra.mxu0 %v1199
    %1534 = vmatprep.subr.mxu0 0.0
    %1535 = vmatpush1.msra.mxu0 %v1200
    %1536 = vmatprep.subr.mxu0 0.0
    %1537 = vmatpush1.msra.mxu0 %v1201
    %1538 = vmatprep.subr.mxu0 0.0
    %1539 = vmatpush1.msra.mxu0 %v1202
    %1540 = vmatprep.subr.mxu0 0.0
    %1541 = vmatpush1.msra.mxu0 0.0
    %1542 = vmatprep.subr.mxu0 0.0
    %1543 = vmatpush1.msra.mxu0 0.0
    %1544 = vmatprep.subr.mxu0 0.0
    %1545 = vmatpush1.msra.mxu0 0.0
    %1546 = vmatprep.subr.mxu0 0.0
    %1547 = vmatpush1.msra.mxu0 0.0
    %1548 = vmatprep.subr.mxu0 0.0
    %1549 = vmatpush1.msra.mxu0 0.0
    %1550 = vmatprep.subr.mxu0 0.0
    %1551 = vmatpush1.msra.mxu0 0.0
    %1552 = vmatprep.subr.mxu0 0.0
    %1553 = vmatpush1.msra.mxu0 0.0
    %1554 = vmatprep.subr.mxu0 0.0
    %1555 = vmatpush1.msra.mxu0 0.0
    %1556 = vmatprep.subr.mxu0 0.0
    %1557 = vmatpush1.msra.mxu0 0.0
    %1558 = vmatprep.subr.mxu0 0.0
    %1559 = vmatpush1.msra.mxu0 0.0
    %1560 = vmatprep.subr.mxu0 0.0
    %1561 = vmatpush1.msra.mxu0 0.0
    %1562 = vmatprep.subr.mxu0 0.0
    %1563 = vmatpush1.msra.mxu0 0.0
    %1564 = vmatprep.subr.mxu0 0.0
    %1565 = vmatpush1.msra.mxu0 0.0
    %1566 = vmatprep.subr.mxu0 0.0
    %1567 = vmatpush1.msra.mxu0 0.0
    %1568 = vmatprep.subr.mxu0 0.0
    %1569 = vmatpush1.msra.mxu0 0.0
    %1570 = vmatprep.subr.mxu0 0.0
    %1571 = vmatpush1.msra.mxu0 0.0
    %1572 = vmatprep.subr.mxu0 0.0
    %1573 = vmatpush1.msra.mxu0 0.0
    %1574 = vmatprep.subr.mxu0 0.0
    %1575 = vmatpush1.msra.mxu0 0.0
    %1576 = vmatprep.subr.mxu0 0.0
    %1577 = vmatpush1.msra.mxu0 0.0
    %1578 = vmatprep.subr.mxu0 0.0
    %1579 = vmatpush1.msra.mxu0 0.0
    %1580 = vmatprep.subr.mxu0 0.0
    %1581 = vmatpush1.msra.mxu0 0.0
    %1582 = vmatprep.subr.mxu0 0.0
    %1583 = vmatpush1.msra.mxu0 0.0
    %1584 = vmatprep.subr.mxu0 0.0
    %1585 = vmatpush1.msra.mxu0 0.0
    %1586 = vmatprep.subr.mxu0 0.0
    %1587 = vmatpush1.msra.mxu0 0.0
    %1588 = vmatprep.subr.mxu0 0.0
    %1589 = vmatpush1.msra.mxu0 0.0
    %1590 = vmatprep.subr.mxu0 0.0
    %1591 = vmatpush1.msra.mxu0 0.0
    %1592 = vmatprep.subr.mxu0 0.0
    %1593 = vmatpush1.msra.mxu0 0.0
    %1594 = vmatprep.subr.mxu0 0.0
    %1595 = vmatpush1.msra.mxu0 0.0
    %1596 = vmatprep.mubr.f32.mxu0 0.0
    %1597 = vmatmul.mubr.f32.gmra.mrb[0].mxu0 %v1530
    %v1598 = vpop.f32.mrb[0].mxu0
    %v1599 = vadd.f32 0.0, %v1598
    %v1600 = vpop.f32.mrb[0].mxu0
    %1601 = vdwg.mxu0
    %v1603 = vrot.slane %v1599, 5
    %v1605 = vadd.f32 %v1196, %v1603
    %v1606 = vxor.u32 %v1605, 2147483648
    %v1607 = vmul.f32 %v1606, 1.442695
    %v1608 = vpow.pop %v1607
    %v1609 = vadd.f32 %v1608, 1.0
    %v1610 = vrcp.pop %v1609
    %v1611 = vmul.f32 1.0, %v1610
    %v1612 = vtanh.pop %v1605
    %v1614 = vrot.slane %v1514, 7
    %v1616 = vmul.f32 %v1611, %v1614
    %1618 = vrot.lane.b32.xlu0 %v1612, 32
    %v1619 = vpop.permute.xlu0 %1618
    %v1621 = vmul.f32 %v1611, %v1619
    %1623 = vrot.lane.b32.xlu0 %v1621, 32
    %v1624 = vpop.permute.xlu0 %1623
    %v1626 = vadd.f32 %v1616, %v1624
    %v1627 = vtanh.pop %v1626
    %1629 = vrot.lane.b32.xlu0 %v1627, 32
    %v1630 = vpop.permute.xlu0 %1629
    %v1632 = vmul.f32 %v1611, %v1630
    %v1633 = vlaneseq
    %v1634 = vshrl.u32 %v1633, 7
    %v1635 = vsub.s32 3, %v1634
    %v1636 = vrot.slane %v1632, %v1635
    %v1637 = vsel %vm655, %v1636, %v1525
    %v1639 = vrot.slane %v1632, 3
    %1640 = vrot.lane.b32.xlu0 %v1639, 64
    %v1641 = vpop.permute.xlu0 %1640
    %v1642 = vsel %vm218, %v1641, 0
    %1644 = vmatprep.subr.mxu0 0.0
    %1645 = vmatpush1.msra.mxu0 %v1199
    %1646 = vmatprep.subr.mxu0 0.0
    %1647 = vmatpush1.msra.mxu0 %v1200
    %1648 = vmatprep.subr.mxu0 0.0
    %1649 = vmatpush1.msra.mxu0 %v1201
    %1650 = vmatprep.subr.mxu0 0.0
    %1651 = vmatpush1.msra.mxu0 %v1202
    %1652 = vmatprep.subr.mxu0 0.0
    %1653 = vmatpush1.msra.mxu0 0.0
    %1654 = vmatprep.subr.mxu0 0.0
    %1655 = vmatpush1.msra.mxu0 0.0
    %1656 = vmatprep.subr.mxu0 0.0
    %1657 = vmatpush1.msra.mxu0 0.0
    %1658 = vmatprep.subr.mxu0 0.0
    %1659 = vmatpush1.msra.mxu0 0.0
    %1660 = vmatprep.subr.mxu0 0.0
    %1661 = vmatpush1.msra.mxu0 0.0
    %1662 = vmatprep.subr.mxu0 0.0
    %1663 = vmatpush1.msra.mxu0 0.0
    %1664 = vmatprep.subr.mxu0 0.0
    %1665 = vmatpush1.msra.mxu0 0.0
    %1666 = vmatprep.subr.mxu0 0.0
    %1667 = vmatpush1.msra.mxu0 0.0
    %1668 = vmatprep.subr.mxu0 0.0
    %1669 = vmatpush1.msra.mxu0 0.0
    %1670 = vmatprep.subr.mxu0 0.0
    %1671 = vmatpush1.msra.mxu0 0.0
    %1672 = vmatprep.subr.mxu0 0.0
    %1673 = vmatpush1.msra.mxu0 0.0
    %1674 = vmatprep.subr.mxu0 0.0
    %1675 = vmatpush1.msra.mxu0 0.0
    %1676 = vmatprep.subr.mxu0 0.0
    %1677 = vmatpush1.msra.mxu0 0.0
    %1678 = vmatprep.subr.mxu0 0.0
    %1679 = vmatpush1.msra.mxu0 0.0
    %1680 = vmatprep.subr.mxu0 0.0
    %1681 = vmatpush1.msra.mxu0 0.0
    %1682 = vmatprep.subr.mxu0 0.0
    %1683 = vmatpush1.msra.mxu0 0.0
    %1684 = vmatprep.subr.mxu0 0.0
    %1685 = vmatpush1.msra.mxu0 0.0
    %1686 = vmatprep.subr.mxu0 0.0
    %1687 = vmatpush1.msra.mxu0 0.0
    %1688 = vmatprep.subr.mxu0 0.0
    %1689 = vmatpush1.msra.mxu0 0.0
    %1690 = vmatprep.subr.mxu0 0.0
    %1691 = vmatpush1.msra.mxu0 0.0
    %1692 = vmatprep.subr.mxu0 0.0
    %1693 = vmatpush1.msra.mxu0 0.0
    %1694 = vmatprep.subr.mxu0 0.0
    %1695 = vmatpush1.msra.mxu0 0.0
    %1696 = vmatprep.subr.mxu0 0.0
    %1697 = vmatpush1.msra.mxu0 0.0
    %1698 = vmatprep.subr.mxu0 0.0
    %1699 = vmatpush1.msra.mxu0 0.0
    %1700 = vmatprep.subr.mxu0 0.0
    %1701 = vmatpush1.msra.mxu0 0.0
    %1702 = vmatprep.subr.mxu0 0.0
    %1703 = vmatpush1.msra.mxu0 0.0
    %1704 = vmatprep.subr.mxu0 0.0
    %1705 = vmatpush1.msra.mxu0 0.0
    %1706 = vmatprep.subr.mxu0 0.0
    %1707 = vmatpush1.msra.mxu0 0.0
    %1708 = vmatprep.mubr.f32.mxu0 0.0
    %1709 = vmatmul.mubr.f32.gmra.mrb[0].mxu0 %v1642
    %v1710 = vpop.f32.mrb[0].mxu0
    %v1711 = vadd.f32 0.0, %v1710
    %v1712 = vpop.f32.mrb[0].mxu0
    %1713 = vdwg.mxu0
    %v1715 = vrot.slane %v1711, 4
    %v1717 = vadd.f32 %v1196, %v1715
    %v1718 = vxor.u32 %v1717, 2147483648
    %v1719 = vmul.f32 %v1718, 1.442695
    %v1720 = vpow.pop %v1719
    %v1721 = vadd.f32 %v1720, 1.0
    %v1722 = vrcp.pop %v1721
    %v1723 = vmul.f32 1.0, %v1722
    %v1724 = vtanh.pop %v1717
    %v1726 = vrot.slane %v1626, 7
    %v1728 = vmul.f32 %v1723, %v1726
    %1730 = vrot.lane.b32.xlu0 %v1724, 32
    %v1731 = vpop.permute.xlu0 %1730
    %v1733 = vmul.f32 %v1723, %v1731
    %1735 = vrot.lane.b32.xlu0 %v1733, 32
    %v1736 = vpop.permute.xlu0 %1735
    %v1738 = vadd.f32 %v1728, %v1736
    %v1739 = vtanh.pop %v1738
    %1741 = vrot.lane.b32.xlu0 %v1739, 32
    %v1742 = vpop.permute.xlu0 %1741
    %v1744 = vmul.f32 %v1723, %v1742
    %v1745 = vlaneseq
    %v1746 = vshrl.u32 %v1745, 7
    %v1747 = vsub.s32 4, %v1746
    %v1748 = vrot.slane %v1744, %v1747
    %v1749 = vsel %vm768, %v1748, %v1637
    %v1751 = vrot.slane %v1744, 4
    %1752 = vrot.lane.b32.xlu0 %v1751, 64
    %v1753 = vpop.permute.xlu0 %1752
    %v1754 = vsel %vm218, %v1753, 0
    %1756 = vmatprep.subr.mxu0 0.0
    %1757 = vmatpush1.msra.mxu0 %v1199
    %1758 = vmatprep.subr.mxu0 0.0
    %1759 = vmatpush1.msra.mxu0 %v1200
    %1760 = vmatprep.subr.mxu0 0.0
    %1761 = vmatpush1.msra.mxu0 %v1201
    %1762 = vmatprep.subr.mxu0 0.0
    %1763 = vmatpush1.msra.mxu0 %v1202
    %1764 = vmatprep.subr.mxu0 0.0
    %1765 = vmatpush1.msra.mxu0 0.0
    %1766 = vmatprep.subr.mxu0 0.0
    %1767 = vmatpush1.msra.mxu0 0.0
    %1768 = vmatprep.subr.mxu0 0.0
    %1769 = vmatpush1.msra.mxu0 0.0
    %1770 = vmatprep.subr.mxu0 0.0
    %1771 = vmatpush1.msra.mxu0 0.0
    %1772 = vmatprep.subr.mxu0 0.0
    %1773 = vmatpush1.msra.mxu0 0.0
    %1774 = vmatprep.subr.mxu0 0.0
    %1775 = vmatpush1.msra.mxu0 0.0
    %1776 = vmatprep.subr.mxu0 0.0
    %1777 = vmatpush1.msra.mxu0 0.0
    %1778 = vmatprep.subr.mxu0 0.0
    %1779 = vmatpush1.msra.mxu0 0.0
    %1780 = vmatprep.subr.mxu0 0.0
    %1781 = vmatpush1.msra.mxu0 0.0
    %1782 = vmatprep.subr.mxu0 0.0
    %1783 = vmatpush1.msra.mxu0 0.0
    %1784 = vmatprep.subr.mxu0 0.0
    %1785 = vmatpush1.msra.mxu0 0.0
    %1786 = vmatprep.subr.mxu0 0.0
    %1787 = vmatpush1.msra.mxu0 0.0
    %1788 = vmatprep.subr.mxu0 0.0
    %1789 = vmatpush1.msra.mxu0 0.0
    %1790 = vmatprep.subr.mxu0 0.0
    %1791 = vmatpush1.msra.mxu0 0.0
    %1792 = vmatprep.subr.mxu0 0.0
    %1793 = vmatpush1.msra.mxu0 0.0
    %1794 = vmatprep.subr.mxu0 0.0
    %1795 = vmatpush1.msra.mxu0 0.0
    %1796 = vmatprep.subr.mxu0 0.0
    %1797 = vmatpush1.msra.mxu0 0.0
    %1798 = vmatprep.subr.mxu0 0.0
    %1799 = vmatpush1.msra.mxu0 0.0
    %1800 = vmatprep.subr.mxu0 0.0
    %1801 = vmatpush1.msra.mxu0 0.0
    %1802 = vmatprep.subr.mxu0 0.0
    %1803 = vmatpush1.msra.mxu0 0.0
    %1804 = vmatprep.subr.mxu0 0.0
    %1805 = vmatpush1.msra.mxu0 0.0
    %1806 = vmatprep.subr.mxu0 0.0
    %1807 = vmatpush1.msra.mxu0 0.0
    %1808 = vmatprep.subr.mxu0 0.0
    %1809 = vmatpush1.msra.mxu0 0.0
    %1810 = vmatprep.subr.mxu0 0.0
    %1811 = vmatpush1.msra.mxu0 0.0
    %1812 = vmatprep.subr.mxu0 0.0
    %1813 = vmatpush1.msra.mxu0 0.0
    %1814 = vmatprep.subr.mxu0 0.0
    %1815 = vmatpush1.msra.mxu0 0.0
    %1816 = vmatprep.subr.mxu0 0.0
    %1817 = vmatpush1.msra.mxu0 0.0
    %1818 = vmatprep.subr.mxu0 0.0
    %1819 = vmatpush1.msra.mxu0 0.0
    %1820 = vmatprep.mubr.f32.mxu0 0.0
    %1821 = vmatmul.mubr.f32.gmra.mrb[0].mxu0 %v1754
    %v1822 = vpop.f32.mrb[0].mxu0
    %v1823 = vadd.f32 0.0, %v1822
    %v1824 = vpop.f32.mrb[0].mxu0
    %1825 = vdwg.mxu0
    %v1827 = vrot.slane %v1823, 3
    %v1829 = vadd.f32 %v1196, %v1827
    %v1830 = vxor.u32 %v1829, 2147483648
    %v1831 = vmul.f32 %v1830, 1.442695
    %v1832 = vpow.pop %v1831
    %v1833 = vadd.f32 %v1832, 1.0
    %v1834 = vrcp.pop %v1833
    %v1835 = vmul.f32 1.0, %v1834
    %v1836 = vtanh.pop %v1829
    %v1838 = vrot.slane %v1738, 7
    %v1840 = vmul.f32 %v1835, %v1838
    %1842 = vrot.lane.b32.xlu0 %v1836, 32
    %v1843 = vpop.permute.xlu0 %1842
    %v1845 = vmul.f32 %v1835, %v1843
    %1847 = vrot.lane.b32.xlu0 %v1845, 32
    %v1848 = vpop.permute.xlu0 %1847
    %v1850 = vadd.f32 %v1840, %v1848
    %v1851 = vtanh.pop %v1850
    %1853 = vrot.lane.b32.xlu0 %v1851, 32
    %v1854 = vpop.permute.xlu0 %1853
    %v1856 = vmul.f32 %v1835, %v1854
    %v1857 = vlaneseq
    %v1858 = vshrl.u32 %v1857, 7
    %v1859 = vsub.s32 5, %v1858
    %v1860 = vrot.slane %v1856, %v1859
    %v1861 = vsel %vm881, %v1860, %v1749
    %v1863 = vrot.slane %v1856, 5
    %1864 = vrot.lane.b32.xlu0 %v1863, 64
    %v1865 = vpop.permute.xlu0 %1864
    %v1866 = vsel %vm218, %v1865, 0
    %1868 = vmatprep.subr.mxu0 0.0
    %1869 = vmatpush1.msra.mxu0 %v1199
    %1870 = vmatprep.subr.mxu0 0.0
    %1871 = vmatpush1.msra.mxu0 %v1200
    %1872 = vmatprep.subr.mxu0 0.0
    %1873 = vmatpush1.msra.mxu0 %v1201
    %1874 = vmatprep.subr.mxu0 0.0
    %1875 = vmatpush1.msra.mxu0 %v1202
    %1876 = vmatprep.subr.mxu0 0.0
    %1877 = vmatpush1.msra.mxu0 0.0
    %1878 = vmatprep.subr.mxu0 0.0
    %1879 = vmatpush1.msra.mxu0 0.0
    %1880 = vmatprep.subr.mxu0 0.0
    %1881 = vmatpush1.msra.mxu0 0.0
    %1882 = vmatprep.subr.mxu0 0.0
    %1883 = vmatpush1.msra.mxu0 0.0
    %1884 = vmatprep.subr.mxu0 0.0
    %1885 = vmatpush1.msra.mxu0 0.0
    %1886 = vmatprep.subr.mxu0 0.0
    %1887 = vmatpush1.msra.mxu0 0.0
    %1888 = vmatprep.subr.mxu0 0.0
    %1889 = vmatpush1.msra.mxu0 0.0
    %1890 = vmatprep.subr.mxu0 0.0
    %1891 = vmatpush1.msra.mxu0 0.0
    %1892 = vmatprep.subr.mxu0 0.0
    %1893 = vmatpush1.msra.mxu0 0.0
    %1894 = vmatprep.subr.mxu0 0.0
    %1895 = vmatpush1.msra.mxu0 0.0
    %1896 = vmatprep.subr.mxu0 0.0
    %1897 = vmatpush1.msra.mxu0 0.0
    %1898 = vmatprep.subr.mxu0 0.0
    %1899 = vmatpush1.msra.mxu0 0.0
    %1900 = vmatprep.subr.mxu0 0.0
    %1901 = vmatpush1.msra.mxu0 0.0
    %1902 = vmatprep.subr.mxu0 0.0
    %1903 = vmatpush1.msra.mxu0 0.0
    %1904 = vmatprep.subr.mxu0 0.0
    %1905 = vmatpush1.msra.mxu0 0.0
    %1906 = vmatprep.subr.mxu0 0.0
    %1907 = vmatpush1.msra.mxu0 0.0
    %1908 = vmatprep.subr.mxu0 0.0
    %1909 = vmatpush1.msra.mxu0 0.0
    %1910 = vmatprep.subr.mxu0 0.0
    %1911 = vmatpush1.msra.mxu0 0.0
    %1912 = vmatprep.subr.mxu0 0.0
    %1913 = vmatpush1.msra.mxu0 0.0
    %1914 = vmatprep.subr.mxu0 0.0
    %1915 = vmatpush1.msra.mxu0 0.0
    %1916 = vmatprep.subr.mxu0 0.0
    %1917 = vmatpush1.msra.mxu0 0.0
    %1918 = vmatprep.subr.mxu0 0.0
    %1919 = vmatpush1.msra.mxu0 0.0
    %1920 = vmatprep.subr.mxu0 0.0
    %1921 = vmatpush1.msra.mxu0 0.0
    %1922 = vmatprep.subr.mxu0 0.0
    %1923 = vmatpush1.msra.mxu0 0.0
    %1924 = vmatprep.subr.mxu0 0.0
    %1925 = vmatpush1.msra.mxu0 0.0
    %1926 = vmatprep.subr.mxu0 0.0
    %1927 = vmatpush1.msra.mxu0 0.0
    %1928 = vmatprep.subr.mxu0 0.0
    %1929 = vmatpush1.msra.mxu0 0.0
    %1930 = vmatprep.subr.mxu0 0.0
    %1931 = vmatpush1.msra.mxu0 0.0
    %1932 = vmatprep.mubr.f32.mxu0 0.0
    %1933 = vmatmul.mubr.f32.gmra.mrb[0].mxu0 %v1866
    %v1934 = vpop.f32.mrb[0].mxu0
    %v1935 = vadd.f32 0.0, %v1934
    %v1936 = vpop.f32.mrb[0].mxu0
    %1937 = vdwg.mxu0
    %v1939 = vrot.slane %v1935, 2
    %v1941 = vadd.f32 %v1196, %v1939
    %v1942 = vxor.u32 %v1941, 2147483648
    %v1943 = vmul.f32 %v1942, 1.442695
    %v1944 = vpow.pop %v1943
    %v1945 = vadd.f32 %v1944, 1.0
    %v1946 = vrcp.pop %v1945
    %v1947 = vmul.f32 1.0, %v1946
    %v1948 = vtanh.pop %v1941
    %v1950 = vrot.slane %v1850, 7
    %v1952 = vmul.f32 %v1947, %v1950
    %1954 = vrot.lane.b32.xlu0 %v1948, 32
    %v1955 = vpop.permute.xlu0 %1954
    %v1957 = vmul.f32 %v1947, %v1955
    %1959 = vrot.lane.b32.xlu0 %v1957, 32
    %v1960 = vpop.permute.xlu0 %1959
    %v1962 = vadd.f32 %v1952, %v1960
    %v1963 = vtanh.pop %v1962
    %1965 = vrot.lane.b32.xlu0 %v1963, 32
    %v1966 = vpop.permute.xlu0 %1965
    %v1968 = vmul.f32 %v1947, %v1966
    %v1969 = vlaneseq
    %v1970 = vshrl.u32 %v1969, 7
    %v1971 = vsub.s32 6, %v1970
    %v1972 = vrot.slane %v1968, %v1971
    %v1973 = vsel %vm994, %v1972, %v1861
    %v1975 = vrot.slane %v1968, 6
    %1976 = vrot.lane.b32.xlu0 %v1975, 64
    %v1977 = vpop.permute.xlu0 %1976
    %v1978 = vsel %vm218, %v1977, 0
    %1980 = vmatprep.subr.mxu0 0.0
    %1981 = vmatpush1.msra.mxu0 %v1199
    %1982 = vmatprep.subr.mxu0 0.0
    %1983 = vmatpush1.msra.mxu0 %v1200
    %1984 = vmatprep.subr.mxu0 0.0
    %1985 = vmatpush1.msra.mxu0 %v1201
    %1986 = vmatprep.subr.mxu0 0.0
    %1987 = vmatpush1.msra.mxu0 %v1202
    %1988 = vmatprep.subr.mxu0 0.0
    %1989 = vmatpush1.msra.mxu0 0.0
    %1990 = vmatprep.subr.mxu0 0.0
    %1991 = vmatpush1.msra.mxu0 0.0
    %1992 = vmatprep.subr.mxu0 0.0
    %1993 = vmatpush1.msra.mxu0 0.0
    %1994 = vmatprep.subr.mxu0 0.0
    %1995 = vmatpush1.msra.mxu0 0.0
    %1996 = vmatprep.subr.mxu0 0.0
    %1997 = vmatpush1.msra.mxu0 0.0
    %1998 = vmatprep.subr.mxu0 0.0
    %1999 = vmatpush1.msra.mxu0 0.0
    %2000 = vmatprep.subr.mxu0 0.0
    %2001 = vmatpush1.msra.mxu0 0.0
    %2002 = vmatprep.subr.mxu0 0.0
    %2003 = vmatpush1.msra.mxu0 0.0
    %2004 = vmatprep.subr.mxu0 0.0
    %2005 = vmatpush1.msra.mxu0 0.0
    %2006 = vmatprep.subr.mxu0 0.0
    %2007 = vmatpush1.msra.mxu0 0.0
    %2008 = vmatprep.subr.mxu0 0.0
    %2009 = vmatpush1.msra.mxu0 0.0
    %2010 = vmatprep.subr.mxu0 0.0
    %2011 = vmatpush1.msra.mxu0 0.0
    %2012 = vmatprep.subr.mxu0 0.0
    %2013 = vmatpush1.msra.mxu0 0.0
    %2014 = vmatprep.subr.mxu0 0.0
    %2015 = vmatpush1.msra.mxu0 0.0
    %2016 = vmatprep.subr.mxu0 0.0
    %2017 = vmatpush1.msra.mxu0 0.0
    %2018 = vmatprep.subr.mxu0 0.0
    %2019 = vmatpush1.msra.mxu0 0.0
    %2020 = vmatprep.subr.mxu0 0.0
    %2021 = vmatpush1.msra.mxu0 0.0
    %2022 = vmatprep.subr.mxu0 0.0
    %2023 = vmatpush1.msra.mxu0 0.0
    %2024 = vmatprep.subr.mxu0 0.0
    %2025 = vmatpush1.msra.mxu0 0.0
    %2026 = vmatprep.subr.mxu0 0.0
    %2027 = vmatpush1.msra.mxu0 0.0
    %2028 = vmatprep.subr.mxu0 0.0
    %2029 = vmatpush1.msra.mxu0 0.0
    %2030 = vmatprep.subr.mxu0 0.0
    %2031 = vmatpush1.msra.mxu0 0.0
    %2032 = vmatprep.subr.mxu0 0.0
    %2033 = vmatpush1.msra.mxu0 0.0
    %2034 = vmatprep.subr.mxu0 0.0
    %2035 = vmatpush1.msra.mxu0 0.0
    %2036 = vmatprep.subr.mxu0 0.0
    %2037 = vmatpush1.msra.mxu0 0.0
    %2038 = vmatprep.subr.mxu0 0.0
    %2039 = vmatpush1.msra.mxu0 0.0
    %2040 = vmatprep.subr.mxu0 0.0
    %2041 = vmatpush1.msra.mxu0 0.0
    %2042 = vmatprep.subr.mxu0 0.0
    %2043 = vmatpush1.msra.mxu0 0.0
    %2044 = vmatprep.mubr.f32.mxu0 0.0
    %2045 = vmatmul.mubr.f32.gmra.mrb[0].mxu0 %v1978
    %v2046 = vpop.f32.mrb[0].mxu0
    %v2047 = vadd.f32 0.0, %v2046
    %v2048 = vpop.f32.mrb[0].mxu0
    %2049 = vdwg.mxu0
    %v2051 = vrot.slane %v2047, 1
    %v2053 = vadd.f32 %v1196, %v2051
    %v2054 = vxor.u32 %v2053, 2147483648
    %v2055 = vmul.f32 %v2054, 1.442695
    %v2056 = vpow.pop %v2055
    %v2057 = vadd.f32 %v2056, 1.0
    %v2058 = vrcp.pop %v2057
    %v2059 = vmul.f32 1.0, %v2058
    %v2060 = vtanh.pop %v2053
    %v2062 = vrot.slane %v1962, 7
    %v2064 = vmul.f32 %v2059, %v2062
    %2066 = vrot.lane.b32.xlu0 %v2060, 32
    %v2067 = vpop.permute.xlu0 %2066
    %v2069 = vmul.f32 %v2059, %v2067
    %2071 = vrot.lane.b32.xlu0 %v2069, 32
    %v2072 = vpop.permute.xlu0 %2071
    %v2074 = vadd.f32 %v2064, %v2072
    %v2075 = vtanh.pop %v2074
    %2077 = vrot.lane.b32.xlu0 %v2075, 32
    %v2078 = vpop.permute.xlu0 %2077
    %v2080 = vmul.f32 %v2059, %v2078
    %v2081 = vlaneseq
    %v2082 = vshrl.u32 %v2081, 7
    %v2083 = vsub.s32 7, %v2082
    %v2084 = vrot.slane %v2080, %v2083
    %v2085 = vsel %vm1107, %v2084, %v1973
    %vm2086 = vcmask 785920
    %v2087 = vsel %vm2086, %v2085, 0.0
    %v2088 = vrot.slane %v2087, 4
    %v2089 = vadd.f32 %v2087, %v2088
    %v2090 = vrot.slane %v2089, 2
    %v2091 = vadd.f32 %v2089, %v2090
    %v2092 = vrot.slane %v2091, 1
    %v2093 = vadd.f32 %v2091, %v2092
    %v2094 = vmul.f32 %v2085, %v2085
    %v2095 = vsel %vm2086, %v2094, 0.0
    %v2096 = vrot.slane %v2095, 4
    %v2097 = vadd.f32 %v2095, %v2096
    %v2098 = vrot.slane %v2097, 2
    %v2099 = vadd.f32 %v2097, %v2098
    %v2100 = vrot.slane %v2099, 1
    %v2101 = vadd.f32 %v2099, %v2100
    %v2102 = vmul.f32 %v2093, 0.125
    %v2103 = vmul.f32 %v2101, 0.125
    %v2104 = vmul.f32 %v2102, %v2102
    %v2105 = vsub.f32 %v2103, %v2104
    %v2106 = vld [vmem:[#allocation11] sm:$0x1]
    %v2107 = vadd.f32 %v2105, 1e-05
    %v2108 = vrsqrt.pop %v2107
    %v2111 = vunpack.c.l.s4 1966171168
    %v2112 = vunpack.c.0.s8 %v2111
    %v2113 = vlaneseq
    %v2114 = vshrl.u32 %v2113, 7
    %v2115 = vsub.s32 %v2112, %v2114
    %v2116 = vrot.slane %v2108, %v2115
    %v2118 = vunpack.c.l.s4 1966171168
    %v2119 = vunpack.c.0.s8 %v2118
    %v2120 = vlaneseq
    %v2121 = vshrl.u32 %v2120, 7
    %v2122 = vsub.s32 %v2119, %v2121
    %v2123 = vrot.slane %v2116, %v2122
    %2124 = vrot.lane.b32.xlu0 %v2123, 64
    %v2125 = vpop.permute.xlu0 %2124
    %v2127 = vmul.f32 %v2106, %v2125
    %v2128 = vld [vmem:[#allocation13] sm:$0x1]
    %v2130 = vlaneseq
    %v2131 = vshrl.u32 %v2130, 7
    %v2132 = vsub.s32 0, %v2131
    %v2133 = vrot.slane %v2127, %v2132
    %2134 = vrot.lane.b32.xlu0 %v2133, 64
    %v2135 = vpop.permute.xlu0 %2134
    %v2137 = vmul.f32 %v2102, %v2135
    %v2140 = vunpack.c.l.s4 1966171168
    %v2141 = vunpack.c.0.s8 %v2140
    %v2142 = vlaneseq
    %v2143 = vshrl.u32 %v2142, 7
    %v2144 = vsub.s32 %v2141, %v2143
    %v2145 = vrot.slane %v2137, %v2144
    %v2147 = vunpack.c.l.s4 1966171168
    %v2148 = vunpack.c.0.s8 %v2147
    %v2149 = vlaneseq
    %v2150 = vshrl.u32 %v2149, 7
    %v2151 = vsub.s32 %v2148, %v2150
    %v2152 = vrot.slane %v2145, %v2151
    %2153 = vrot.lane.b32.xlu0 %v2152, 64
    %v2154 = vpop.permute.xlu0 %2153
    %v2156 = vsub.f32 %v2128, %v2154
    %v2157 = vmul.f32 %v2085, %v2135
    %v2159 = vlaneseq
    %v2160 = vshrl.u32 %v2159, 7
    %v2161 = vsub.s32 0, %v2160
    %v2162 = vrot.slane %v2156, %v2161
    %2163 = vrot.lane.b32.xlu0 %v2162, 64
    %v2164 = vpop.permute.xlu0 %2163
    %v2166 = vadd.f32 %v2157, %v2164
    %v2167 = vld [vmem:[%s9] sm:$0xff]
    %v2168 = vld [vmem:[%s9 + $0x8] sm:$0xff]
    %v2169 = vld [vmem:[%s9 + $0x10] sm:$0xff]
    %v2170 = vld [vmem:[%s9 + $0x18] sm:$0xff]
    %v2171 = vld [vmem:[%s10] sm:$0x1]
    %v2173 = vlaneseq
    %v2174 = vshrl.u32 %v2173, 7
    %v2175 = vsub.s32 0, %v2174
    %v2176 = vrot.slane %v2171, %v2175
    %2179 = vrot.lane.b32.xlu0 %v2166, 64
    %v2180 = vpop.permute.xlu0 %2179
    %v2181 = vsel %vm218, %v2180, 0
    %2183 = vmatprep.subr.mxu0 0.0
    %2184 = vmatpush1.msra.mxu0 %v2167
    %2185 = vmatprep.subr.mxu0 0.0
    %2186 = vmatpush1.msra.mxu0 %v2168
    %2187 = vmatprep.subr.mxu0 0.0
    %2188 = vmatpush1.msra.mxu0 %v2169
    %2189 = vmatprep.subr.mxu0 0.0
    %2190 = vmatpush1.msra.mxu0 %v2170
    %2191 = vmatprep.subr.mxu0 0.0
    %2192 = vmatpush1.msra.mxu0 0.0
    %2193 = vmatprep.subr.mxu0 0.0
    %2194 = vmatpush1.msra.mxu0 0.0
    %2195 = vmatprep.subr.mxu0 0.0
    %2196 = vmatpush1.msra.mxu0 0.0
    %2197 = vmatprep.subr.mxu0 0.0
    %2198 = vmatpush1.msra.mxu0 0.0
    %2199 = vmatprep.subr.mxu0 0.0
    %2200 = vmatpush1.msra.mxu0 0.0
    %2201 = vmatprep.subr.mxu0 0.0
    %2202 = vmatpush1.msra.mxu0 0.0
    %2203 = vmatprep.subr.mxu0 0.0
    %2204 = vmatpush1.msra.mxu0 0.0
    %2205 = vmatprep.subr.mxu0 0.0
    %2206 = vmatpush1.msra.mxu0 0.0
    %2207 = vmatprep.subr.mxu0 0.0
    %2208 = vmatpush1.msra.mxu0 0.0
    %2209 = vmatprep.subr.mxu0 0.0
    %2210 = vmatpush1.msra.mxu0 0.0
    %2211 = vmatprep.subr.mxu0 0.0
    %2212 = vmatpush1.msra.mxu0 0.0
    %2213 = vmatprep.subr.mxu0 0.0
    %2214 = vmatpush1.msra.mxu0 0.0
    %2215 = vmatprep.subr.mxu0 0.0
    %2216 = vmatpush1.msra.mxu0 0.0
    %2217 = vmatprep.subr.mxu0 0.0
    %2218 = vmatpush1.msra.mxu0 0.0
    %2219 = vmatprep.subr.mxu0 0.0
    %2220 = vmatpush1.msra.mxu0 0.0
    %2221 = vmatprep.subr.mxu0 0.0
    %2222 = vmatpush1.msra.mxu0 0.0
    %2223 = vmatprep.subr.mxu0 0.0
    %2224 = vmatpush1.msra.mxu0 0.0
    %2225 = vmatprep.subr.mxu0 0.0
    %2226 = vmatpush1.msra.mxu0 0.0
    %2227 = vmatprep.subr.mxu0 0.0
    %2228 = vmatpush1.msra.mxu0 0.0
    %2229 = vmatprep.subr.mxu0 0.0
    %2230 = vmatpush1.msra.mxu0 0.0
    %2231 = vmatprep.subr.mxu0 0.0
    %2232 = vmatpush1.msra.mxu0 0.0
    %2233 = vmatprep.subr.mxu0 0.0
    %2234 = vmatpush1.msra.mxu0 0.0
    %2235 = vmatprep.subr.mxu0 0.0
    %2236 = vmatpush1.msra.mxu0 0.0
    %2237 = vmatprep.subr.mxu0 0.0
    %2238 = vmatpush1.msra.mxu0 0.0
    %2239 = vmatprep.subr.mxu0 0.0
    %2240 = vmatpush1.msra.mxu0 0.0
    %2241 = vmatprep.subr.mxu0 0.0
    %2242 = vmatpush1.msra.mxu0 0.0
    %2243 = vmatprep.subr.mxu0 0.0
    %2244 = vmatpush1.msra.mxu0 0.0
    %2245 = vmatprep.subr.mxu0 0.0
    %2246 = vmatpush1.msra.mxu0 0.0
    %2247 = vmatprep.mubr.f32.mxu0 0.0
    %2248 = vmatmul.mubr.f32.gmra.mrb[0].mxu0 %v2181
    %v2249 = vpop.f32.mrb[0].mxu0
    %v2250 = vadd.f32 %v2176, %v2249
    %v2251 = vpop.f32.mrb[0].mxu0
    %2252 = vdwg.mxu0
    %v2253 = vtanh.pop %v2250
    %2254 = vst [vmem:[#allocation14] sm:$0xff] %v2253
    // Predicated region
    $region74: #{tpu_custom_call.1} parent=1 // pred_check
      _
    $region75: #{tpu_custom_call.1} parent=1 // pred_check_branch
      %2256 = sbr.rel (0) target = $region77
    $region76: #{tpu_custom_call.1} parent=1 // pred_region
      %s2258 = ssub.s32 128, 128
      %2259 = vsyncadd [#allocation4], %s2258
      %s2261 = sshll.u32 [#allocation14], 4
      %s2262 = int_to_ptr.vmem [resolvable:$true] %s2261
      %2264 = dma.vmem_to_hbm [thread:$0]  %s2262, 128, %s11, [#allocation4]
    $region77: #{tpu_custom_call.1} parent=1 // pred_fallthru
      _
    // Predicated region
    $region78: #{tpu_custom_call.1} parent=1 // pred_check
      _
    $region79: #{tpu_custom_call.1} parent=1 // pred_check_branch
      %2266 = sbr.rel (0) target = $region81
    $region80: #{tpu_custom_call.1} parent=1 // pred_region
      %2267 = dma.done [#allocation4], 128
    $region81: #{tpu_custom_call.1} parent=1 // pred_fallthru
      _
    %2268 = vsyncpa [#allocation3], 1
    %2269 = vsyncpa [#allocation6], 1
    %2270 = vsyncpa [#allocation9], 1
    %2271 = vsyncpa [#allocation12], 1
    %2272 = vsyncpa [#allocation4], 1

</llo_original>
